<compile_context>
chip_gen: v7x
topology: tpu7x:2x2x1
jax: 0.10.0
libtpu: 0.0.40
codegen_flags: <defaults>
</compile_context>

<pallas_src>
import jax
import jax.numpy as jnp
from jax.experimental import pallas as pl
from jax.experimental.pallas import tpu as pltpu

EPS = 1e-5
LANE = 128
VMEM_LIMIT = 48 * 1024 * 1024  # explicit scoped-VMEM budget (fits v7x's 64 MiB)


# ------------------------- small helpers -------------------------

def _round_up(a, b):
    return (a + b - 1) // b * b


def _pad2(x, rows, cols):
    r, c = x.shape
    return jnp.pad(x, ((0, rows - r), (0, cols - c)))


def _pad_row(v, cp):
    # (C,) -> (1, CP) zero-padded (padded BN channels get gamma=beta=0 -> stay 0)
    return jnp.pad(v.reshape(1, -1), ((0, 0), (0, cp - v.shape[0])))


def _tile_stats(y):
    """Per-tile channel sum / sum-of-squares packed into one (8, CP) slab."""
    s = jnp.sum(y, axis=0, keepdims=True)
    sq = jnp.sum(y * y, axis=0, keepdims=True)
    pad = jnp.zeros((6, y.shape[1]), jnp.float32)
    return jnp.concatenate([s, sq, pad], axis=0)


# ------------------------- Pallas kernels -------------------------

def _conv_stats_kernel(x_ref, w_ref, y_ref, st_ref):
    # bf16 x bf16 -> f32 accumulate on the MXU; BN partial stats in the epilogue.
    y = jnp.dot(x_ref[...], w_ref[...], preferred_element_type=jnp.float32)
    y_ref[...] = y
    st_ref[...] = _tile_stats(y)[None, :, :]


def _conv_dual_stats_kernel(p_ref, w1_ref, xs_ref, ws_ref,
                            y1_ref, ys_ref, st1_ref, sts_ref):
    # conv1 matmul and the fused skip-path 1x1 matmul share one M grid.
    y1 = jnp.dot(p_ref[...], w1_ref[...], preferred_element_type=jnp.float32)
    ys = jnp.dot(xs_ref[...], ws_ref[...], preferred_element_type=jnp.float32)
    y1_ref[...] = y1
    ys_ref[...] = ys
    st1_ref[...] = _tile_stats(y1)[None, :, :]
    sts_ref[...] = _tile_stats(ys)[None, :, :]


def _make_bn_fold_kernel(inv_m):
    def kernel(st_ref, g_ref, b_ref, scale_ref, shift_ref):
        tot = jnp.sum(st_ref[...], axis=0)          # (8, CP): row0 = sum, row1 = sumsq
        total_sum = tot[0:1, :]
        total_sq = tot[1:2, :]
        mean = total_sum * inv_m
        var = total_sq * inv_m - mean * mean        # E[y^2] - mean^2, single pass
        scale = g_ref[...] * jax.lax.rsqrt(var + EPS)
        scale_ref[...] = scale
        shift_ref[...] = b_ref[...] - mean * scale
    return kernel


def _scale_shift_relu_kernel(y_ref, sc_ref, sh_ref, o_ref):
    o_ref[...] = jnp.maximum(y_ref[...] * sc_ref[...] + sh_ref[...], 0.0)


def _dual_scale_shift_add_relu_kernel(y1_ref, sc1_ref, sh1_ref,
                                      ys_ref, scs_ref, shs_ref, o_ref):
    main = y1_ref[...] * sc1_ref[...] + sh1_ref[...]
    skip = ys_ref[...] * scs_ref[...] + shs_ref[...]
    o_ref[...] = jnp.maximum(main + skip, 0.0)


# ------------------------- pallas_call wrappers -------------------------

def conv_stats(x_bf16, w_bf16, tm):
    mp, k = x_bf16.shape
    _, cp = w_bf16.shape
    g = mp // tm
    return pl.pallas_call(
        _conv_stats_kernel,
        out_shape=(jax.ShapeDtypeStruct((mp, cp), jnp.float32),
                   jax.ShapeDtypeStruct((g, 8, cp), jnp.float32)),
        grid=(g,),
        in_specs=[pl.BlockSpec((tm, k), lambda i: (i, 0)),
                  pl.BlockSpec((k, cp), lambda i: (0, 0))],
        out_specs=(pl.BlockSpec((tm, cp), lambda i: (i, 0)),
                   pl.BlockSpec((1, 8, cp), lambda i: (i, 0, 0))),
        compiler_params=pltpu.CompilerParams(
            dimension_semantics=("parallel",), vmem_limit_bytes=VMEM_LIMIT),
    )(x_bf16, w_bf16)


def conv_dual_stats(p_bf16, w1_bf16, xs_bf16, ws_bf16, tm):
    mp, k1 = p_bf16.shape
    _, cp = w1_bf16.shape
    _, ks = xs_bf16.shape
    g = mp // tm
    return pl.pallas_call(
        _conv_dual_stats_kernel,
        out_shape=(jax.ShapeDtypeStruct((mp, cp), jnp.float32),
                   jax.ShapeDtypeStruct((mp, cp), jnp.float32),
                   jax.ShapeDtypeStruct((g, 8, cp), jnp.float32),
                   jax.ShapeDtypeStruct((g, 8, cp), jnp.float32)),
        grid=(g,),
        in_specs=[pl.BlockSpec((tm, k1), lambda i: (i, 0)),
                  pl.BlockSpec((k1, cp), lambda i: (0, 0)),
                  pl.BlockSpec((tm, ks), lambda i: (i, 0)),
                  pl.BlockSpec((ks, cp), lambda i: (0, 0))],
        out_specs=(pl.BlockSpec((tm, cp), lambda i: (i, 0)),
                   pl.BlockSpec((tm, cp), lambda i: (i, 0)),
                   pl.BlockSpec((1, 8, cp), lambda i: (i, 0, 0)),
                   pl.BlockSpec((1, 8, cp), lambda i: (i, 0, 0))),
        compiler_params=pltpu.CompilerParams(
            dimension_semantics=("parallel",), vmem_limit_bytes=VMEM_LIMIT),
    )(p_bf16, w1_bf16, xs_bf16, ws_bf16)


def bn_fold(stats, gamma_row, beta_row, m_true):
    g, _, cp = stats.shape
    return pl.pallas_call(
        _make_bn_fold_kernel(1.0 / float(m_true)),
        out_shape=(jax.ShapeDtypeStruct((1, cp), jnp.float32),
                   jax.ShapeDtypeStruct((1, cp), jnp.float32)),
        grid=(1,),
        in_specs=[pl.BlockSpec((g, 8, cp), lambda i: (0, 0, 0)),
                  pl.BlockSpec((1, cp), lambda i: (0, 0)),
                  pl.BlockSpec((1, cp), lambda i: (0, 0))],
        out_specs=(pl.BlockSpec((1, cp), lambda i: (0, 0)),
                   pl.BlockSpec((1, cp), lambda i: (0, 0))),
        compiler_params=pltpu.CompilerParams(
            dimension_semantics=("arbitrary",), vmem_limit_bytes=VMEM_LIMIT),
    )(stats, gamma_row, beta_row)


def scale_shift_relu(y, scale, shift, tm):
    mp, cp = y.shape
    return pl.pallas_call(
        _scale_shift_relu_kernel,
        out_shape=jax.ShapeDtypeStruct((mp, cp), jnp.float32),
        grid=(mp // tm,),
        in_specs=[pl.BlockSpec((tm, cp), lambda i: (i, 0)),
                  pl.BlockSpec((1, cp), lambda i: (0, 0)),
                  pl.BlockSpec((1, cp), lambda i: (0, 0))],
        out_specs=pl.BlockSpec((tm, cp), lambda i: (i, 0)),
        compiler_params=pltpu.CompilerParams(
            dimension_semantics=("parallel",), vmem_limit_bytes=VMEM_LIMIT),
    )(y, scale, shift)


def dual_scale_shift_add_relu(y1, sc1, sh1, ys, scs, shs, tm):
    mp, cp = y1.shape
    return pl.pallas_call(
        _dual_scale_shift_add_relu_kernel,
        out_shape=jax.ShapeDtypeStruct((mp, cp), jnp.float32),
        grid=(mp // tm,),
        in_specs=[pl.BlockSpec((tm, cp), lambda i: (i, 0)),
                  pl.BlockSpec((1, cp), lambda i: (0, 0)),
                  pl.BlockSpec((1, cp), lambda i: (0, 0)),
                  pl.BlockSpec((tm, cp), lambda i: (i, 0)),
                  pl.BlockSpec((1, cp), lambda i: (0, 0)),
                  pl.BlockSpec((1, cp), lambda i: (0, 0))],
        out_specs=pl.BlockSpec((tm, cp), lambda i: (i, 0)),
        compiler_params=pltpu.CompilerParams(
            dimension_semantics=("parallel",), vmem_limit_bytes=VMEM_LIMIT),
    )(y1, sc1, sh1, ys, scs, shs)


# ------------------------- JAX glue (im2col, layout) -------------------------

def im2col(x, ksize, stride, pad):
    """x: [N,H,W,C] -> patches [N*Ho*Wo, ksize*ksize*C] ordered (kh, kw, c)."""
    n, h, w, c = x.shape
    xp = jnp.pad(x, ((0, 0), (pad, pad), (pad, pad), (0, 0)))
    ho = (h + 2 * pad - ksize) // stride + 1
    wo = (w + 2 * pad - ksize) // stride + 1
    cols = []
    for dy in range(ksize):
        for dx in range(ksize):
            cols.append(xp[:, dy:dy + stride * ho:stride, dx:dx + stride * wo:stride, :])
    patches = jnp.concatenate(cols, axis=-1)  # [N, Ho, Wo, k*k*C]
    return patches.reshape(n * ho * wo, ksize * ksize * c), ho, wo


def resnet_layer_forward(x_nchw, params, stride):
    x = jnp.transpose(x_nchw, (0, 2, 3, 1)).astype(jnp.float32)  # NHWC
    n, h, w, cin = x.shape
    cout = params["w0"].shape[-1]
    cp = _round_up(cout, LANE)

    # ----- conv0: 3x3, stride, pad 1 (bias dropped: cancelled by training-mode BN) -----
    p0, ho, wo = im2col(x, 3, stride, 1)               # [M, 9*Cin]
    m = n * ho * wo
    tm = min(512, _round_up(m, 8))
    mp = _round_up(m, tm)                              # ragged M handled by zero rows
    k0 = _round_up(9 * cin, LANE)
    p0p = _pad2(p0, mp, k0).astype(jnp.bfloat16)
    w0p = _pad2(params["w0"].reshape(9 * cin, cout), k0, cp).astype(jnp.bfloat16)
    y0, st0 = conv_stats(p0p, w0p, tm)
    sc0, sh0 = bn_fold(st0, _pad_row(params["g0"], cp), _pad_row(params["be0"], cp), m)
    a0 = scale_shift_relu(y0, sc0, sh0, tm)            # [Mp, CP]

    # ----- conv1: 3x3 stride 1 pad 1, fused with the skip 1x1/stride conv -----
    a0_img = a0[:m, :cout].reshape(n, ho, wo, cout)
    p1, _, _ = im2col(a0_img, 3, 1, 1)                 # [M, 9*Cout]
    k1 = _round_up(9 * cout, LANE)
    p1p = _pad2(p1, mp, k1).astype(jnp.bfloat16)
    w1p = _pad2(params["w1"].reshape(9 * cout, cout), k1, cp).astype(jnp.bfloat16)

    xs = x[:, ::stride, ::stride, :].reshape(m, cin)   # 1x1 strided subsample
    ks = _round_up(cin, LANE)
    xsp = _pad2(xs, mp, ks).astype(jnp.bfloat16)
    wsp = _pad2(params["ws"].reshape(cin, cout), ks, cp).astype(jnp.bfloat16)

    y1, ys, st1, sts = conv_dual_stats(p1p, w1p, xsp, wsp, tm)
    sc1, sh1 = bn_fold(st1, _pad_row(params["g1"], cp), _pad_row(params["be1"], cp), m)
    scs, shs = bn_fold(sts, _pad_row(params["gs"], cp), _pad_row(params["bes"], cp), m)

    out = dual_scale_shift_add_relu(y1, sc1, sh1, ys, scs, shs, tm)  # [Mp, CP]
    out_img = out[:m, :cout].reshape(n, ho, wo, cout)
    return jnp.transpose(out_img, (0, 3, 1, 2))        # back to NCHW


# ------------------------- pure-JAX reference (faithful to the nn.Module) -------------------------

def reference_forward(x_nchw, params, stride):
    x = jnp.transpose(x_nchw, (0, 2, 3, 1)).astype(jnp.float32)
    dn = ("NHWC", "HWIO", "NHWC")

    def conv(inp, w, b, s, pad):
        y = jax.lax.conv_general_dilated(
            inp, w, (s, s), [(pad, pad), (pad, pad)],
            dimension_numbers=dn, precision=jax.lax.Precision.HIGHEST)
        return y + b.reshape(1, 1, 1, -1)

    def bn(y, g, be):
        mmean = jnp.mean(y, axis=(0, 1, 2), keepdims=True)
        v = jnp.mean((y - mmean) ** 2, axis=(0, 1, 2), keepdims=True)
        return (y - mmean) * jax.lax.rsqrt(v + EPS) * g.reshape(1, 1, 1, -1) + be.reshape(1, 1, 1, -1)

    a0 = jax.nn.relu(bn(conv(x, params["w0"], params["b0"], stride, 1), params["g0"], params["be0"]))
    y1 = bn(conv(a0, params["w1"], params["b1"], 1, 1), params["g1"], params["be1"])
    ys = bn(conv(x, params["ws"], params["bs"], stride, 0), params["gs"], params["bes"])
    out = jax.nn.relu(y1 + ys)
    return jnp.transpose(out, (0, 3, 1, 2))


# ------------------------- main -------------------------

if __name__ == "__main__":
    N, Cin, H, W = 2, 4, 16, 16
    Cout = 8
    downsample = True
    stride = 2 if downsample else 1

    key = jax.random.PRNGKey(0)
    k = jax.random.split(key, 16)
    params = {
        # conv weights HWIO (kh, kw, in, out); BN affine gamma/beta per channel.
        # Biases are kept for the reference; the Pallas path omits them because
        # training-mode BN's mean subtraction cancels a per-channel bias exactly.
        "w0": 0.2 * jax.random.normal(k[0], (3, 3, Cin, Cout), jnp.float32),
        "b0": 0.1 * jax.random.normal(k[1], (Cout,), jnp.float32),
        "g0": 1.0 + 0.1 * jax.random.normal(k[2], (Cout,), jnp.float32),
        "be0": 0.1 * jax.random.normal(k[3], (Cout,), jnp.float32),
        "w1": 0.2 * jax.random.normal(k[4], (3, 3, Cout, Cout), jnp.float32),
        "b1": 0.1 * jax.random.normal(k[5], (Cout,), jnp.float32),
        "g1": 1.0 + 0.1 * jax.random.normal(k[6], (Cout,), jnp.float32),
        "be1": 0.1 * jax.random.normal(k[7], (Cout,), jnp.float32),
        "ws": 0.2 * jax.random.normal(k[8], (1, 1, Cin, Cout), jnp.float32),
        "bs": 0.1 * jax.random.normal(k[9], (Cout,), jnp.float32),
        "gs": 1.0 + 0.1 * jax.random.normal(k[10], (Cout,), jnp.float32),
        "bes": 0.1 * jax.random.normal(k[11], (Cout,), jnp.float32),
    }
    x = jax.random.normal(k[12], (N, Cin, H, W), jnp.float32)

    forward = jax.jit(resnet_layer_forward, static_argnames=("stride",))
    out = jax.block_until_ready(forward(x, params, stride=stride))
    ref = jax.block_until_ready(reference_forward(x, params, stride))

    assert out.shape == (N, Cout, H // stride, W // stride), out.shape
    err = float(jnp.max(jnp.abs(out - ref)))
    # tolerance accounts for bf16 MXU inputs (f32 accumulation) vs. the f32 HIGHEST reference
    if err > 6e-2:
        raise AssertionError(f"Pallas kernel mismatch vs reference, max abs err = {err}")
    print("KERNEL_OK")
</pallas_src>

<mosaic_0001>
module attributes {stable_mosaic.version = 11 : i64} {
  func.func @_conv_stats_kernel(%arg0: i32, %arg1: memref<128x128xbf16, #tpu.memory_space<vmem>>, %arg2: memref<128x128xbf16, #tpu.memory_space<vmem>>, %arg3: memref<128x128xf32, #tpu.memory_space<vmem>>, %arg4: memref<1x8x128xf32, #tpu.memory_space<vmem>>) attributes {dimension_semantics = [#tpu.dimension_semantics<parallel>], iteration_bounds = array<i64: 1>, scalar_prefetch = 0 : i64, scratch_operands = 0 : i64, tpu.core_type = #tpu.core_type<tc>, window_params = [{transform_indices = @transform_0, window_bounds = array<i64: 128, 128>}, {pipeline_mode = #tpu.pipeline_mode<synchronous>, transform_indices = @transform_1, window_bounds = array<i64: 128, 128>}, {transform_indices = @transform_2, window_bounds = array<i64: 128, 128>}, {transform_indices = @transform_3, window_bounds = array<i64: 1, 8, 128>}]} {
    %c0 = arith.constant 0 : index
    %c0_0 = arith.constant 0 : index
    %0 = vector.load %arg1[%c0, %c0_0] : memref<128x128xbf16, #tpu.memory_space<vmem>>, vector<128x128xbf16>
    %c0_1 = arith.constant 0 : index
    %c0_2 = arith.constant 0 : index
    %1 = vector.load %arg2[%c0_1, %c0_2] : memref<128x128xbf16, #tpu.memory_space<vmem>>, vector<128x128xbf16>
    %cst = arith.constant dense<0.000000e+00> : vector<128x128xf32>
    %2 = tpu.matmul %0, %1, %cst {dimension_numbers = #tpu.dot_dimension_numbers<[1], [0], [0], [1], [0, 0, 1, 1], [], []>} : vector<128x128xbf16>, vector<128x128xbf16>, vector<128x128xf32> -> vector<128x128xf32>
    %c0_3 = arith.constant 0 : index
    %c0_4 = arith.constant 0 : index
    %3 = vector.load %arg3[%c0_3, %c0_4] : memref<128x128xf32, #tpu.memory_space<vmem>>, vector<128x128xf32>
    tpu.vector_store %arg3[%c0_3, %c0_4], %2 {strides = array<i32>} : memref<128x128xf32, #tpu.memory_space<vmem>>, vector<128x128xf32>,
    %cst_5 = arith.constant dense<0.000000e+00> : vector<128xf32>
    %4 = vector.multi_reduction <add>, %2, %cst_5 [0] : vector<128x128xf32> to vector<128xf32>
    %5 = vector.shape_cast %4 : vector<128xf32> to vector<1x128xf32>
    %6 = arith.mulf %2, %2 : vector<128x128xf32>
    %cst_6 = arith.constant dense<0.000000e+00> : vector<128xf32>
    %7 = vector.multi_reduction <add>, %6, %cst_6 [0] : vector<128x128xf32> to vector<128xf32>
    %8 = vector.shape_cast %7 : vector<128xf32> to vector<1x128xf32>
    %cst_7 = arith.constant 0.000000e+00 : f32
    %9 = vector.broadcast %cst_7 : f32 to vector<6x128xf32>
    %10 = tpu.concatenate %5, %8, %9 in 0 : vector<1x128xf32>, vector<1x128xf32>, vector<6x128xf32> -> vector<8x128xf32>
    %11 = vector.shape_cast %10 : vector<8x128xf32> to vector<1x8x128xf32>
    %c0_8 = arith.constant 0 : index
    %c0_9 = arith.constant 0 : index
    %c0_10 = arith.constant 0 : index
    %12 = vector.load %arg4[%c0_8, %c0_9, %c0_10] : memref<1x8x128xf32, #tpu.memory_space<vmem>>, vector<1x8x128xf32>
    tpu.vector_store %arg4[%c0_8, %c0_9, %c0_10], %11 {strides = array<i32>} : memref<1x8x128xf32, #tpu.memory_space<vmem>>, vector<1x8x128xf32>,
    return
  }
  func.func @transform_0(%arg0: i32) -> (i32, i32) {
    %c0_i32 = arith.constant 0 : i32
    %c0_i32_0 = arith.constant 0 : i32
    return %arg0, %c0_i32 : i32, i32
  }
  func.func @transform_1(%arg0: i32) -> (i32, i32) {
    %c0_i32 = arith.constant 0 : i32
    %c0_i32_0 = arith.constant 0 : i32
    %c0_i32_1 = arith.constant 0 : i32
    return %c0_i32, %c0_i32_0 : i32, i32
  }
  func.func @transform_2(%arg0: i32) -> (i32, i32) {
    %c0_i32 = arith.constant 0 : i32
    %c0_i32_0 = arith.constant 0 : i32
    return %arg0, %c0_i32 : i32, i32
  }
  func.func @transform_3(%arg0: i32) -> (i32, i32, i32) {
    %c0_i32 = arith.constant 0 : i32
    %c0_i32_0 = arith.constant 0 : i32
    %c0_i32_1 = arith.constant 0 : i32
    return %arg0, %c0_i32, %c0_i32_0 : i32, i32, i32
  }
}

module attributes {stable_mosaic.version = 11 : i64} {
  func.func @kernel(%arg0: i32, %arg1: memref<1x8x128xf32, #tpu.memory_space<vmem>>, %arg2: memref<1x128xf32, #tpu.memory_space<vmem>>, %arg3: memref<1x128xf32, #tpu.memory_space<vmem>>, %arg4: memref<1x128xf32, #tpu.memory_space<vmem>>, %arg5: memref<1x128xf32, #tpu.memory_space<vmem>>) attributes {dimension_semantics = [#tpu.dimension_semantics<arbitrary>], iteration_bounds = array<i64: 1>, scalar_prefetch = 0 : i64, scratch_operands = 0 : i64, tpu.core_type = #tpu.core_type<tc>, window_params = [{pipeline_mode = #tpu.pipeline_mode<synchronous>, transform_indices = @transform_0, window_bounds = array<i64: 1, 8, 128>}, {pipeline_mode = #tpu.pipeline_mode<synchronous>, transform_indices = @transform_1, window_bounds = array<i64: 1, 128>}, {pipeline_mode = #tpu.pipeline_mode<synchronous>, transform_indices = @transform_2, window_bounds = array<i64: 1, 128>}, {pipeline_mode = #tpu.pipeline_mode<synchronous>, transform_indices = @transform_3, window_bounds = array<i64: 1, 128>}, {pipeline_mode = #tpu.pipeline_mode<synchronous>, transform_indices = @transform_4, window_bounds = array<i64: 1, 128>}]} {
    %c0 = arith.constant 0 : index
    %c0_0 = arith.constant 0 : index
    %c0_1 = arith.constant 0 : index
    %0 = vector.load %arg1[%c0, %c0_0, %c0_1] : memref<1x8x128xf32, #tpu.memory_space<vmem>>, vector<1x8x128xf32>
    %cst = arith.constant dense<0.000000e+00> : vector<8x128xf32>
    %1 = vector.multi_reduction <add>, %0, %cst [0] : vector<1x8x128xf32> to vector<8x128xf32>
    %2 = vector.extract_strided_slice %1 {offsets = [0, 0], sizes = [1, 128], strides = [1, 1]} : vector<8x128xf32> to vector<1x128xf32>
    %3 = vector.extract_strided_slice %1 {offsets = [1, 0], sizes = [1, 128], strides = [1, 1]} : vector<8x128xf32> to vector<1x128xf32>
    %cst_2 = arith.constant 7.812500e-03 : f32
    %4 = vector.broadcast %cst_2 : f32 to vector<1x128xf32>
    %5 = arith.mulf %2, %4 : vector<1x128xf32>
    %cst_3 = arith.constant 7.812500e-03 : f32
    %6 = vector.broadcast %cst_3 : f32 to vector<1x128xf32>
    %7 = arith.mulf %3, %6 : vector<1x128xf32>
    %8 = arith.mulf %5, %5 : vector<1x128xf32>
    %9 = arith.subf %7, %8 : vector<1x128xf32>
    %c0_4 = arith.constant 0 : index
    %c0_5 = arith.constant 0 : index
    %10 = vector.load %arg2[%c0_4, %c0_5] : memref<1x128xf32, #tpu.memory_space<vmem>>, vector<1x128xf32>
    %cst_6 = arith.constant 9.99999974E-6 : f32
    %11 = vector.broadcast %cst_6 : f32 to vector<1x128xf32>
    %12 = arith.addf %9, %11 : vector<1x128xf32>
    %13 = math.rsqrt %12 : vector<1x128xf32>
    %14 = arith.mulf %10, %13 : vector<1x128xf32>
    %c0_7 = arith.constant 0 : index
    %c0_8 = arith.constant 0 : index
    %15 = vector.load %arg4[%c0_7, %c0_8] : memref<1x128xf32, #tpu.memory_space<vmem>>, vector<1x128xf32>
    tpu.vector_store %arg4[%c0_7, %c0_8], %14 {strides = array<i32>} : memref<1x128xf32, #tpu.memory_space<vmem>>, vector<1x128xf32>,
    %c0_9 = arith.constant 0 : index
    %c0_10 = arith.constant 0 : index
    %16 = vector.load %arg3[%c0_9, %c0_10] : memref<1x128xf32, #tpu.memory_space<vmem>>, vector<1x128xf32>
    %17 = arith.mulf %5, %14 : vector<1x128xf32>
    %18 = arith.subf %16, %17 : vector<1x128xf32>
    %c0_11 = arith.constant 0 : index
    %c0_12 = arith.constant 0 : index
    %19 = vector.load %arg5[%c0_11, %c0_12] : memref<1x128xf32, #tpu.memory_space<vmem>>, vector<1x128xf32>
    tpu.vector_store %arg5[%c0_11, %c0_12], %18 {strides = array<i32>} : memref<1x128xf32, #tpu.memory_space<vmem>>, vector<1x128xf32>,
    return
  }
  func.func @transform_0(%arg0: i32) -> (i32, i32, i32) {
    %c0_i32 = arith.constant 0 : i32
    %c0_i32_0 = arith.constant 0 : i32
    %c0_i32_1 = arith.constant 0 : i32
    %c0_i32_2 = arith.constant 0 : i32
    return %c0_i32, %c0_i32_0, %c0_i32_1 : i32, i32, i32
  }
  func.func @transform_1(%arg0: i32) -> (i32, i32) {
    %c0_i32 = arith.constant 0 : i32
    %c0_i32_0 = arith.constant 0 : i32
    %c0_i32_1 = arith.constant 0 : i32
    return %c0_i32, %c0_i32_0 : i32, i32
  }
  func.func @transform_2(%arg0: i32) -> (i32, i32) {
    %c0_i32 = arith.constant 0 : i32
    %c0_i32_0 = arith.constant 0 : i32
    %c0_i32_1 = arith.constant 0 : i32
    return %c0_i32, %c0_i32_0 : i32, i32
  }
  func.func @transform_3(%arg0: i32) -> (i32, i32) {
    %c0_i32 = arith.constant 0 : i32
    %c0_i32_0 = arith.constant 0 : i32
    %c0_i32_1 = arith.constant 0 : i32
    return %c0_i32, %c0_i32_0 : i32, i32
  }
  func.func @transform_4(%arg0: i32) -> (i32, i32) {
    %c0_i32 = arith.constant 0 : i32
    %c0_i32_0 = arith.constant 0 : i32
    %c0_i32_1 = arith.constant 0 : i32
    return %c0_i32, %c0_i32_0 : i32, i32
  }
}

module attributes {stable_mosaic.version = 11 : i64} {
  func.func @_scale_shift_relu_kernel(%arg0: i32, %arg1: memref<128x128xf32, #tpu.memory_space<vmem>>, %arg2: memref<1x128xf32, #tpu.memory_space<vmem>>, %arg3: memref<1x128xf32, #tpu.memory_space<vmem>>, %arg4: memref<128x128xf32, #tpu.memory_space<vmem>>) attributes {dimension_semantics = [#tpu.dimension_semantics<parallel>], iteration_bounds = array<i64: 1>, scalar_prefetch = 0 : i64, scratch_operands = 0 : i64, tpu.core_type = #tpu.core_type<tc>, window_params = [{transform_indices = @transform_0, window_bounds = array<i64: 128, 128>}, {pipeline_mode = #tpu.pipeline_mode<synchronous>, transform_indices = @transform_1, window_bounds = array<i64: 1, 128>}, {pipeline_mode = #tpu.pipeline_mode<synchronous>, transform_indices = @transform_2, window_bounds = array<i64: 1, 128>}, {transform_indices = @transform_3, window_bounds = array<i64: 128, 128>}]} {
    %c0 = arith.constant 0 : index
    %c0_0 = arith.constant 0 : index
    %0 = vector.load %arg1[%c0, %c0_0] : memref<128x128xf32, #tpu.memory_space<vmem>>, vector<128x128xf32>
    %c0_1 = arith.constant 0 : index
    %c0_2 = arith.constant 0 : index
    %1 = vector.load %arg2[%c0_1, %c0_2] : memref<1x128xf32, #tpu.memory_space<vmem>>, vector<1x128xf32>
    %2 = vector.broadcast %1 : vector<1x128xf32> to vector<128x128xf32>
    %3 = arith.mulf %0, %2 : vector<128x128xf32>
    %c0_3 = arith.constant 0 : index
    %c0_4 = arith.constant 0 : index
    %4 = vector.load %arg3[%c0_3, %c0_4] : memref<1x128xf32, #tpu.memory_space<vmem>>, vector<1x128xf32>
    %5 = vector.broadcast %4 : vector<1x128xf32> to vector<128x128xf32>
    %6 = arith.addf %3, %5 : vector<128x128xf32>
    %cst = arith.constant 0.000000e+00 : f32
    %7 = vector.broadcast %cst : f32 to vector<128x128xf32>
    %8 = arith.maximumf %6, %7 : vector<128x128xf32>
    %c0_5 = arith.constant 0 : index
    %c0_6 = arith.constant 0 : index
    %9 = vector.load %arg4[%c0_5, %c0_6] : memref<128x128xf32, #tpu.memory_space<vmem>>, vector<128x128xf32>
    tpu.vector_store %arg4[%c0_5, %c0_6], %8 {strides = array<i32>} : memref<128x128xf32, #tpu.memory_space<vmem>>, vector<128x128xf32>,
    return
  }
  func.func @transform_0(%arg0: i32) -> (i32, i32) {
    %c0_i32 = arith.constant 0 : i32
    %c0_i32_0 = arith.constant 0 : i32
    return %arg0, %c0_i32 : i32, i32
  }
  func.func @transform_1(%arg0: i32) -> (i32, i32) {
    %c0_i32 = arith.constant 0 : i32
    %c0_i32_0 = arith.constant 0 : i32
    %c0_i32_1 = arith.constant 0 : i32
    return %c0_i32, %c0_i32_0 : i32, i32
  }
  func.func @transform_2(%arg0: i32) -> (i32, i32) {
    %c0_i32 = arith.constant 0 : i32
    %c0_i32_0 = arith.constant 0 : i32
    %c0_i32_1 = arith.constant 0 : i32
    return %c0_i32, %c0_i32_0 : i32, i32
  }
  func.func @transform_3(%arg0: i32) -> (i32, i32) {
    %c0_i32 = arith.constant 0 : i32
    %c0_i32_0 = arith.constant 0 : i32
    return %arg0, %c0_i32 : i32, i32
  }
}

module attributes {stable_mosaic.version = 11 : i64} {
  func.func @_conv_dual_stats_kernel(%arg0: i32, %arg1: memref<128x128xbf16, #tpu.memory_space<vmem>>, %arg2: memref<128x128xbf16, #tpu.memory_space<vmem>>, %arg3: memref<128x128xbf16, #tpu.memory_space<vmem>>, %arg4: memref<128x128xbf16, #tpu.memory_space<vmem>>, %arg5: memref<128x128xf32, #tpu.memory_space<vmem>>, %arg6: memref<128x128xf32, #tpu.memory_space<vmem>>, %arg7: memref<1x8x128xf32, #tpu.memory_space<vmem>>, %arg8: memref<1x8x128xf32, #tpu.memory_space<vmem>>) attributes {dimension_semantics = [#tpu.dimension_semantics<parallel>], iteration_bounds = array<i64: 1>, scalar_prefetch = 0 : i64, scratch_operands = 0 : i64, tpu.core_type = #tpu.core_type<tc>, window_params = [{transform_indices = @transform_0, window_bounds = array<i64: 128, 128>}, {pipeline_mode = #tpu.pipeline_mode<synchronous>, transform_indices = @transform_1, window_bounds = array<i64: 128, 128>}, {transform_indices = @transform_2, window_bounds = array<i64: 128, 128>}, {pipeline_mode = #tpu.pipeline_mode<synchronous>, transform_indices = @transform_3, window_bounds = array<i64: 128, 128>}, {transform_indices = @transform_4, window_bounds = array<i64: 128, 128>}, {transform_indices = @transform_5, window_bounds = array<i64: 128, 128>}, {transform_indices = @transform_6, window_bounds = array<i64: 1, 8, 128>}, {transform_indices = @transform_7, window_bounds = array<i64: 1, 8, 128>}]} {
    %c0 = arith.constant 0 : index
    %c0_0 = arith.constant 0 : index
    %0 = vector.load %arg1[%c0, %c0_0] : memref<128x128xbf16, #tpu.memory_space<vmem>>, vector<128x128xbf16>
    %c0_1 = arith.constant 0 : index
    %c0_2 = arith.constant 0 : index
    %1 = vector.load %arg2[%c0_1, %c0_2] : memref<128x128xbf16, #tpu.memory_space<vmem>>, vector<128x128xbf16>
    %cst = arith.constant dense<0.000000e+00> : vector<128x128xf32>
    %2 = tpu.matmul %0, %1, %cst {dimension_numbers = #tpu.dot_dimension_numbers<[1], [0], [0], [1], [0, 0, 1, 1], [], []>} : vector<128x128xbf16>, vector<128x128xbf16>, vector<128x128xf32> -> vector<128x128xf32>
    %c0_3 = arith.constant 0 : index
    %c0_4 = arith.constant 0 : index
    %3 = vector.load %arg3[%c0_3, %c0_4] : memref<128x128xbf16, #tpu.memory_space<vmem>>, vector<128x128xbf16>
    %c0_5 = arith.constant 0 : index
    %c0_6 = arith.constant 0 : index
    %4 = vector.load %arg4[%c0_5, %c0_6] : memref<128x128xbf16, #tpu.memory_space<vmem>>, vector<128x128xbf16>
    %cst_7 = arith.constant dense<0.000000e+00> : vector<128x128xf32>
    %5 = tpu.matmul %3, %4, %cst_7 {dimension_numbers = #tpu.dot_dimension_numbers<[1], [0], [0], [1], [0, 0, 1, 1], [], []>} : vector<128x128xbf16>, vector<128x128xbf16>, vector<128x128xf32> -> vector<128x128xf32>
    %c0_8 = arith.constant 0 : index
    %c0_9 = arith.constant 0 : index
    %6 = vector.load %arg5[%c0_8, %c0_9] : memref<128x128xf32, #tpu.memory_space<vmem>>, vector<128x128xf32>
    tpu.vector_store %arg5[%c0_8, %c0_9], %2 {strides = array<i32>} : memref<128x128xf32, #tpu.memory_space<vmem>>, vector<128x128xf32>,
    %c0_10 = arith.constant 0 : index
    %c0_11 = arith.constant 0 : index
    %7 = vector.load %arg6[%c0_10, %c0_11] : memref<128x128xf32, #tpu.memory_space<vmem>>, vector<128x128xf32>
    tpu.vector_store %arg6[%c0_10, %c0_11], %5 {strides = array<i32>} : memref<128x128xf32, #tpu.memory_space<vmem>>, vector<128x128xf32>,
    %cst_12 = arith.constant dense<0.000000e+00> : vector<128xf32>
    %8 = vector.multi_reduction <add>, %2, %cst_12 [0] : vector<128x128xf32> to vector<128xf32>
    %9 = vector.shape_cast %8 : vector<128xf32> to vector<1x128xf32>
    %10 = arith.mulf %2, %2 : vector<128x128xf32>
    %cst_13 = arith.constant dense<0.000000e+00> : vector<128xf32>
    %11 = vector.multi_reduction <add>, %10, %cst_13 [0] : vector<128x128xf32> to vector<128xf32>
    %12 = vector.shape_cast %11 : vector<128xf32> to vector<1x128xf32>
    %cst_14 = arith.constant 0.000000e+00 : f32
    %13 = vector.broadcast %cst_14 : f32 to vector<6x128xf32>
    %14 = tpu.concatenate %9, %12, %13 in 0 : vector<1x128xf32>, vector<1x128xf32>, vector<6x128xf32> -> vector<8x128xf32>
    %15 = vector.shape_cast %14 : vector<8x128xf32> to vector<1x8x128xf32>
    %c0_15 = arith.constant 0 : index
    %c0_16 = arith.constant 0 : index
    %c0_17 = arith.constant 0 : index
    %16 = vector.load %arg7[%c0_15, %c0_16, %c0_17] : memref<1x8x128xf32, #tpu.memory_space<vmem>>, vector<1x8x128xf32>
    tpu.vector_store %arg7[%c0_15, %c0_16, %c0_17], %15 {strides = array<i32>} : memref<1x8x128xf32, #tpu.memory_space<vmem>>, vector<1x8x128xf32>,
    %cst_18 = arith.constant dense<0.000000e+00> : vector<128xf32>
    %17 = vector.multi_reduction <add>, %5, %cst_18 [0] : vector<128x128xf32> to vector<128xf32>
    %18 = vector.shape_cast %17 : vector<128xf32> to vector<1x128xf32>
    %19 = arith.mulf %5, %5 : vector<128x128xf32>
    %cst_19 = arith.constant dense<0.000000e+00> : vector<128xf32>
    %20 = vector.multi_reduction <add>, %19, %cst_19 [0] : vector<128x128xf32> to vector<128xf32>
    %21 = vector.shape_cast %20 : vector<128xf32> to vector<1x128xf32>
    %cst_20 = arith.constant 0.000000e+00 : f32
    %22 = vector.broadcast %cst_20 : f32 to vector<6x128xf32>
    %23 = tpu.concatenate %18, %21, %22 in 0 : vector<1x128xf32>, vector<1x128xf32>, vector<6x128xf32> -> vector<8x128xf32>
    %24 = vector.shape_cast %23 : vector<8x128xf32> to vector<1x8x128xf32>
    %c0_21 = arith.constant 0 : index
    %c0_22 = arith.constant 0 : index
    %c0_23 = arith.constant 0 : index
    %25 = vector.load %arg8[%c0_21, %c0_22, %c0_23] : memref<1x8x128xf32, #tpu.memory_space<vmem>>, vector<1x8x128xf32>
    tpu.vector_store %arg8[%c0_21, %c0_22, %c0_23], %24 {strides = array<i32>} : memref<1x8x128xf32, #tpu.memory_space<vmem>>, vector<1x8x128xf32>,
    return
  }
  func.func @transform_0(%arg0: i32) -> (i32, i32) {
    %c0_i32 = arith.constant 0 : i32
    %c0_i32_0 = arith.constant 0 : i32
    return %arg0, %c0_i32 : i32, i32
  }
  func.func @transform_1(%arg0: i32) -> (i32, i32) {
    %c0_i32 = arith.constant 0 : i32
    %c0_i32_0 = arith.constant 0 : i32
    %c0_i32_1 = arith.constant 0 : i32
    return %c0_i32, %c0_i32_0 : i32, i32
  }
  func.func @transform_2(%arg0: i32) -> (i32, i32) {
    %c0_i32 = arith.constant 0 : i32
    %c0_i32_0 = arith.constant 0 : i32
    return %arg0, %c0_i32 : i32, i32
  }
  func.func @transform_3(%arg0: i32) -> (i32, i32) {
    %c0_i32 = arith.constant 0 : i32
    %c0_i32_0 = arith.constant 0 : i32
    %c0_i32_1 = arith.constant 0 : i32
    return %c0_i32, %c0_i32_0 : i32, i32
  }
  func.func @transform_4(%arg0: i32) -> (i32, i32) {
    %c0_i32 = arith.constant 0 : i32
    %c0_i32_0 = arith.constant 0 : i32
    return %arg0, %c0_i32 : i32, i32
  }
  func.func @transform_5(%arg0: i32) -> (i32, i32) {
    %c0_i32 = arith.constant 0 : i32
    %c0_i32_0 = arith.constant 0 : i32
    return %arg0, %c0_i32 : i32, i32
  }
  func.func @transform_6(%arg0: i32) -> (i32, i32, i32) {
    %c0_i32 = arith.constant 0 : i32
    %c0_i32_0 = arith.constant 0 : i32
    %c0_i32_1 = arith.constant 0 : i32
    return %arg0, %c0_i32, %c0_i32_0 : i32, i32, i32
  }
  func.func @transform_7(%arg0: i32) -> (i32, i32, i32) {
    %c0_i32 = arith.constant 0 : i32
    %c0_i32_0 = arith.constant 0 : i32
    %c0_i32_1 = arith.constant 0 : i32
    return %arg0, %c0_i32, %c0_i32_0 : i32, i32, i32
  }
}

module attributes {stable_mosaic.version = 11 : i64} {
  func.func @_dual_scale_shift_add_relu_kernel(%arg0: i32, %arg1: memref<128x128xf32, #tpu.memory_space<vmem>>, %arg2: memref<1x128xf32, #tpu.memory_space<vmem>>, %arg3: memref<1x128xf32, #tpu.memory_space<vmem>>, %arg4: memref<128x128xf32, #tpu.memory_space<vmem>>, %arg5: memref<1x128xf32, #tpu.memory_space<vmem>>, %arg6: memref<1x128xf32, #tpu.memory_space<vmem>>, %arg7: memref<128x128xf32, #tpu.memory_space<vmem>>) attributes {dimension_semantics = [#tpu.dimension_semantics<parallel>], iteration_bounds = array<i64: 1>, scalar_prefetch = 0 : i64, scratch_operands = 0 : i64, tpu.core_type = #tpu.core_type<tc>, window_params = [{transform_indices = @transform_0, window_bounds = array<i64: 128, 128>}, {pipeline_mode = #tpu.pipeline_mode<synchronous>, transform_indices = @transform_1, window_bounds = array<i64: 1, 128>}, {pipeline_mode = #tpu.pipeline_mode<synchronous>, transform_indices = @transform_2, window_bounds = array<i64: 1, 128>}, {transform_indices = @transform_3, window_bounds = array<i64: 128, 128>}, {pipeline_mode = #tpu.pipeline_mode<synchronous>, transform_indices = @transform_4, window_bounds = array<i64: 1, 128>}, {pipeline_mode = #tpu.pipeline_mode<synchronous>, transform_indices = @transform_5, window_bounds = array<i64: 1, 128>}, {transform_indices = @transform_6, window_bounds = array<i64: 128, 128>}]} {
    %c0 = arith.constant 0 : index
    %c0_0 = arith.constant 0 : index
    %0 = vector.load %arg1[%c0, %c0_0] : memref<128x128xf32, #tpu.memory_space<vmem>>, vector<128x128xf32>
    %c0_1 = arith.constant 0 : index
    %c0_2 = arith.constant 0 : index
    %1 = vector.load %arg2[%c0_1, %c0_2] : memref<1x128xf32, #tpu.memory_space<vmem>>, vector<1x128xf32>
    %2 = vector.broadcast %1 : vector<1x128xf32> to vector<128x128xf32>
    %3 = arith.mulf %0, %2 : vector<128x128xf32>
    %c0_3 = arith.constant 0 : index
    %c0_4 = arith.constant 0 : index
    %4 = vector.load %arg3[%c0_3, %c0_4] : memref<1x128xf32, #tpu.memory_space<vmem>>, vector<1x128xf32>
    %5 = vector.broadcast %4 : vector<1x128xf32> to vector<128x128xf32>
    %6 = arith.addf %3, %5 : vector<128x128xf32>
    %c0_5 = arith.constant 0 : index
    %c0_6 = arith.constant 0 : index
    %7 = vector.load %arg4[%c0_5, %c0_6] : memref<128x128xf32, #tpu.memory_space<vmem>>, vector<128x128xf32>
    %c0_7 = arith.constant 0 : index
    %c0_8 = arith.constant 0 : index
    %8 = vector.load %arg5[%c0_7, %c0_8] : memref<1x128xf32, #tpu.memory_space<vmem>>, vector<1x128xf32>
    %9 = vector.broadcast %8 : vector<1x128xf32> to vector<128x128xf32>
    %10 = arith.mulf %7, %9 : vector<128x128xf32>
    %c0_9 = arith.constant 0 : index
    %c0_10 = arith.constant 0 : index
    %11 = vector.load %arg6[%c0_9, %c0_10] : memref<1x128xf32, #tpu.memory_space<vmem>>, vector<1x128xf32>
    %12 = vector.broadcast %11 : vector<1x128xf32> to vector<128x128xf32>
    %13 = arith.addf %10, %12 : vector<128x128xf32>
    %14 = arith.addf %6, %13 : vector<128x128xf32>
    %cst = arith.constant 0.000000e+00 : f32
    %15 = vector.broadcast %cst : f32 to vector<128x128xf32>
    %16 = arith.maximumf %14, %15 : vector<128x128xf32>
    %c0_11 = arith.constant 0 : index
    %c0_12 = arith.constant 0 : index
    %17 = vector.load %arg7[%c0_11, %c0_12] : memref<128x128xf32, #tpu.memory_space<vmem>>, vector<128x128xf32>
    tpu.vector_store %arg7[%c0_11, %c0_12], %16 {strides = array<i32>} : memref<128x128xf32, #tpu.memory_space<vmem>>, vector<128x128xf32>,
    return
  }
  func.func @transform_0(%arg0: i32) -> (i32, i32) {
    %c0_i32 = arith.constant 0 : i32
    %c0_i32_0 = arith.constant 0 : i32
    return %arg0, %c0_i32 : i32, i32
  }
  func.func @transform_1(%arg0: i32) -> (i32, i32) {
    %c0_i32 = arith.constant 0 : i32
    %c0_i32_0 = arith.constant 0 : i32
    %c0_i32_1 = arith.constant 0 : i32
    return %c0_i32, %c0_i32_0 : i32, i32
  }
  func.func @transform_2(%arg0: i32) -> (i32, i32) {
    %c0_i32 = arith.constant 0 : i32
    %c0_i32_0 = arith.constant 0 : i32
    %c0_i32_1 = arith.constant 0 : i32
    return %c0_i32, %c0_i32_0 : i32, i32
  }
  func.func @transform_3(%arg0: i32) -> (i32, i32) {
    %c0_i32 = arith.constant 0 : i32
    %c0_i32_0 = arith.constant 0 : i32
    return %arg0, %c0_i32 : i32, i32
  }
  func.func @transform_4(%arg0: i32) -> (i32, i32) {
    %c0_i32 = arith.constant 0 : i32
    %c0_i32_0 = arith.constant 0 : i32
    %c0_i32_1 = arith.constant 0 : i32
    return %c0_i32, %c0_i32_0 : i32, i32
  }
  func.func @transform_5(%arg0: i32) -> (i32, i32) {
    %c0_i32 = arith.constant 0 : i32
    %c0_i32_0 = arith.constant 0 : i32
    %c0_i32_1 = arith.constant 0 : i32
    return %c0_i32, %c0_i32_0 : i32, i32
  }
  func.func @transform_6(%arg0: i32) -> (i32, i32) {
    %c0_i32 = arith.constant 0 : i32
    %c0_i32_0 = arith.constant 0 : i32
    return %arg0, %c0_i32 : i32, i32
  }
}

</mosaic_0001>

<llo_original>
// kernel: resnet_layer_forward.9
$region0: #{resnet_layer_forward.9}
  #allocation0 [shape = 'u32[]', space=smem, size = 0x4, offset = 0x4, fixed_abs, tag = 'smem constant byte address 0x4 - core index']
  #allocation1 [shape = 'u32[144,128]{1,0:T(1,128)}', space=vmem, size = 0x12000, scoped, tag = 'internal scratch']
  %s0 = inlined_call_operand.vmem [shape: f32[128,128], index: 0, kind: input, shape index: {}]
  %s1 = inlined_call_operand.vmem [shape: f32[1,128], index: 1, kind: input, shape index: {}]
  %s2 = inlined_call_operand.vmem [shape: f32[1,128], index: 2, kind: input, shape index: {}]
  %s3 = inlined_call_operand.vmem [shape: f32[128,128], index: 3, kind: output, shape index: {}]
  %s4 = sld [smem:[#allocation0]]
  $region22: #{resnet_layer_forward.9} parent=0
    _
  %s6 = ssub.s32 1, %s4
  %s7 = scalar_select 0, %s6, %s4
  // Predicated region
  $region2: #{resnet_layer_forward.9} parent=0 // pred_check
    _
  $region3: #{resnet_layer_forward.9} parent=0 // pred_check_branch
    %9 = sbr.rel (0) target = $region5
  $region4: #{resnet_layer_forward.9} parent=0 // pred_region
    _
  $region5: #{resnet_layer_forward.9} parent=0 // pred_fallthru
    _
  // Predicated region
  $region6: #{resnet_layer_forward.9} parent=0 // pred_check
    _
  $region7: #{resnet_layer_forward.9} parent=0 // pred_check_branch
    %11 = sbr.rel (0) target = $region9
  $region8: #{resnet_layer_forward.9} parent=0 // pred_region
    _
  $region9: #{resnet_layer_forward.9} parent=0 // pred_fallthru
    _
  // Predicated region
  $region10: #{resnet_layer_forward.9} parent=0 // pred_check
    _
  $region11: #{resnet_layer_forward.9} parent=0 // pred_check_branch
    %13 = sbr.rel (0) target = $region13
  $region12: #{resnet_layer_forward.9} parent=0 // pred_region
    _
  $region13: #{resnet_layer_forward.9} parent=0 // pred_fallthru
    _
  %v14 = vld [vmem:[%s0] sm:$0xff]
  %v15 = vld [vmem:[%s0 + $0x8] sm:$0xff]
  %v16 = vld [vmem:[%s0 + $0x10] sm:$0xff]
  %v17 = vld [vmem:[%s0 + $0x18] sm:$0xff]
  %v18 = vld [vmem:[%s0 + $0x20] sm:$0xff]
  %v19 = vld [vmem:[%s0 + $0x28] sm:$0xff]
  %v20 = vld [vmem:[%s0 + $0x30] sm:$0xff]
  %v21 = vld [vmem:[%s0 + $0x38] sm:$0xff]
  %v22 = vld [vmem:[%s0 + $0x40] sm:$0xff]
  %v23 = vld [vmem:[%s0 + $0x48] sm:$0xff]
  %v24 = vld [vmem:[%s0 + $0x50] sm:$0xff]
  %v25 = vld [vmem:[%s0 + $0x58] sm:$0xff]
  %v26 = vld [vmem:[%s0 + $0x60] sm:$0xff]
  %v27 = vld [vmem:[%s0 + $0x68] sm:$0xff]
  %v28 = vld [vmem:[%s0 + $0x70] sm:$0xff]
  %v29 = vld [vmem:[%s0 + $0x78] sm:$0xff]
  %v30 = vld [vmem:[%s1] sm:$0x1]
  %v32 = vlaneseq
  %v33 = vshrl.u32 %v32, 7
  %v34 = vsub.s32 0, %v33
  %v35 = vrot.slane %v30, %v34
  %v37 = vmul.f32 %v14, %v35
  %v38 = vmul.f32 %v15, %v35
  %v39 = vmul.f32 %v16, %v35
  %v40 = vmul.f32 %v17, %v35
  %v41 = vmul.f32 %v18, %v35
  %v42 = vmul.f32 %v19, %v35
  %v43 = vmul.f32 %v20, %v35
  %v44 = vmul.f32 %v21, %v35
  %v45 = vmul.f32 %v22, %v35
  %v46 = vmul.f32 %v23, %v35
  %v47 = vmul.f32 %v24, %v35
  %v48 = vmul.f32 %v25, %v35
  %v49 = vmul.f32 %v26, %v35
  %v50 = vmul.f32 %v27, %v35
  %v51 = vmul.f32 %v28, %v35
  %v52 = vmul.f32 %v29, %v35
  %v53 = vld [vmem:[%s2] sm:$0x1]
  %v55 = vlaneseq
  %v56 = vshrl.u32 %v55, 7
  %v57 = vsub.s32 0, %v56
  %v58 = vrot.slane %v53, %v57
  %v60 = vadd.f32 %v37, %v58
  %v61 = vadd.f32 %v38, %v58
  %v62 = vadd.f32 %v39, %v58
  %v63 = vadd.f32 %v40, %v58
  %v64 = vadd.f32 %v41, %v58
  %v65 = vadd.f32 %v42, %v58
  %v66 = vadd.f32 %v43, %v58
  %v67 = vadd.f32 %v44, %v58
  %v68 = vadd.f32 %v45, %v58
  %v69 = vadd.f32 %v46, %v58
  %v70 = vadd.f32 %v47, %v58
  %v71 = vadd.f32 %v48, %v58
  %v72 = vadd.f32 %v49, %v58
  %v73 = vadd.f32 %v50, %v58
  %v74 = vadd.f32 %v51, %v58
  %v75 = vadd.f32 %v52, %v58
  %v76 = vmax.f32 %v60, 0.0
  %v77 = vmax.f32 %v61, 0.0
  %v78 = vmax.f32 %v62, 0.0
  %v79 = vmax.f32 %v63, 0.0
  %v80 = vmax.f32 %v64, 0.0
  %v81 = vmax.f32 %v65, 0.0
  %v82 = vmax.f32 %v66, 0.0
  %v83 = vmax.f32 %v67, 0.0
  %v84 = vmax.f32 %v68, 0.0
  %v85 = vmax.f32 %v69, 0.0
  %v86 = vmax.f32 %v70, 0.0
  %v87 = vmax.f32 %v71, 0.0
  %v88 = vmax.f32 %v72, 0.0
  %v89 = vmax.f32 %v73, 0.0
  %v90 = vmax.f32 %v74, 0.0
  %v91 = vmax.f32 %v75, 0.0
  %92 = vst [vmem:[%s3] sm:$0xff] %v76
  %93 = vst [vmem:[%s3 + $0x8] sm:$0xff] %v77
  %94 = vst [vmem:[%s3 + $0x10] sm:$0xff] %v78
  %95 = vst [vmem:[%s3 + $0x18] sm:$0xff] %v79
  %96 = vst [vmem:[%s3 + $0x20] sm:$0xff] %v80
  %97 = vst [vmem:[%s3 + $0x28] sm:$0xff] %v81
  %98 = vst [vmem:[%s3 + $0x30] sm:$0xff] %v82
  %99 = vst [vmem:[%s3 + $0x38] sm:$0xff] %v83
  %100 = vst [vmem:[%s3 + $0x40] sm:$0xff] %v84
  %101 = vst [vmem:[%s3 + $0x48] sm:$0xff] %v85
  %102 = vst [vmem:[%s3 + $0x50] sm:$0xff] %v86
  %103 = vst [vmem:[%s3 + $0x58] sm:$0xff] %v87
  %104 = vst [vmem:[%s3 + $0x60] sm:$0xff] %v88
  %105 = vst [vmem:[%s3 + $0x68] sm:$0xff] %v89
  %106 = vst [vmem:[%s3 + $0x70] sm:$0xff] %v90
  %107 = vst [vmem:[%s3 + $0x78] sm:$0xff] %v91
  // Predicated region
  $region14: #{resnet_layer_forward.9} parent=0 // pred_check
    _
  $region15: #{resnet_layer_forward.9} parent=0 // pred_check_branch
    %109 = sbr.rel (0) target = $region17
  $region16: #{resnet_layer_forward.9} parent=0 // pred_region
    _
  $region17: #{resnet_layer_forward.9} parent=0 // pred_fallthru
    _
  // Predicated region
  $region18: #{resnet_layer_forward.9} parent=0 // pred_check
    _
  $region19: #{resnet_layer_forward.9} parent=0 // pred_check_branch
    %111 = sbr.rel (0) target = $region21
  $region20: #{resnet_layer_forward.9} parent=0 // pred_region
    _
  $region21: #{resnet_layer_forward.9} parent=0 // pred_fallthru
    _

// kernel: resnet_layer_forward.8
$region0: #{resnet_layer_forward.8}
  #allocation0 [shape = 'u32[]', space=smem, size = 0x4, offset = 0x4, fixed_abs, tag = 'smem constant byte address 0x4 - core index']
  #allocation1 [shape = 'u32[144,128]{1,0:T(1,128)}', space=vmem, size = 0x12000, scoped, tag = 'internal scratch']
  %s0 = inlined_call_operand.vmem [shape: f32[1,8,128], index: 0, kind: input, shape index: {}]
  %s1 = inlined_call_operand.vmem [shape: f32[1,128], index: 1, kind: input, shape index: {}]
  %s2 = inlined_call_operand.vmem [shape: f32[1,128], index: 2, kind: input, shape index: {}]
  %s3 = inlined_call_operand.vmem [shape: f32[1,128], index: 3, kind: output, shape index: {0}]
  %s4 = inlined_call_operand.vmem [shape: f32[1,128], index: 4, kind: output, shape index: {1}]
  %5 = xla_tuple %s3, %s4
  %s6 = sld [smem:[#allocation0]]
  $region30: #{resnet_layer_forward.8} parent=0
    _
  %s8 = ssub.s32 1, %s6
  %s9 = scalar_select 0, %s8, %s6
  // Predicated region
  $region2: #{resnet_layer_forward.8} parent=0 // pred_check
    _
  $region3: #{resnet_layer_forward.8} parent=0 // pred_check_branch
    %11 = sbr.rel (0) target = $region5
  $region4: #{resnet_layer_forward.8} parent=0 // pred_region
    _
  $region5: #{resnet_layer_forward.8} parent=0 // pred_fallthru
    _
  // Predicated region
  $region6: #{resnet_layer_forward.8} parent=0 // pred_check
    _
  $region7: #{resnet_layer_forward.8} parent=0 // pred_check_branch
    %13 = sbr.rel (0) target = $region9
  $region8: #{resnet_layer_forward.8} parent=0 // pred_region
    _
  $region9: #{resnet_layer_forward.8} parent=0 // pred_fallthru
    _
  // Predicated region
  $region10: #{resnet_layer_forward.8} parent=0 // pred_check
    _
  $region11: #{resnet_layer_forward.8} parent=0 // pred_check_branch
    %15 = sbr.rel (0) target = $region13
  $region12: #{resnet_layer_forward.8} parent=0 // pred_region
    _
  $region13: #{resnet_layer_forward.8} parent=0 // pred_fallthru
    _
  %v16 = vld [vmem:[%s0] sm:$0xff]
  %v17 = vadd.f32 %v16, 0.0
  %v18 = vmul.f32 %v17, 0.0078125
  %v19 = vmul.f32 %v18, %v18
  %v21 = vrot.slane %v19, 7
  %v23 = vsub.f32 %v18, %v21
  %v24 = vld [vmem:[%s1] sm:$0x1]
  %v25 = vadd.f32 %v23, 1e-05
  %v26 = vrsqrt.pop %v25
  %v29 = vunpack.c.l.s4 1966171168
  %v30 = vunpack.c.0.s8 %v29
  %v31 = vlaneseq
  %v32 = vshrl.u32 %v31, 7
  %v33 = vsub.s32 %v30, %v32
  %v34 = vrot.slane %v26, %v33
  %v35 = vcombine.high %v34, %v34
  %v37 = vunpack.c.l.s4 1966171168
  %v38 = vunpack.c.0.s8 %v37
  %v39 = vlaneseq
  %v40 = vshrl.u32 %v39, 7
  %v41 = vsub.s32 %v38, %v40
  %v42 = vrot.slane %v35, %v41
  %v44 = vmul.f32 %v24, %v42
  %45 = vst [vmem:[%s3] sm:$0x1] %v44
  %v46 = vld [vmem:[%s2] sm:$0x1]
  %v47 = vmul.f32 %v18, %v44
  %v48 = vsub.f32 %v46, %v47
  %49 = vst [vmem:[%s4] sm:$0x1] %v48
  // Predicated region
  $region14: #{resnet_layer_forward.8} parent=0 // pred_check
    _
  $region15: #{resnet_layer_forward.8} parent=0 // pred_check_branch
    %51 = sbr.rel (0) target = $region17
  $region16: #{resnet_layer_forward.8} parent=0 // pred_region
    _
  $region17: #{resnet_layer_forward.8} parent=0 // pred_fallthru
    _
  // Predicated region
  $region18: #{resnet_layer_forward.8} parent=0 // pred_check
    _
  $region19: #{resnet_layer_forward.8} parent=0 // pred_check_branch
    %53 = sbr.rel (0) target = $region21
  $region20: #{resnet_layer_forward.8} parent=0 // pred_region
    _
  $region21: #{resnet_layer_forward.8} parent=0 // pred_fallthru
    _
  // Predicated region
  $region22: #{resnet_layer_forward.8} parent=0 // pred_check
    _
  $region23: #{resnet_layer_forward.8} parent=0 // pred_check_branch
    %55 = sbr.rel (0) target = $region25
  $region24: #{resnet_layer_forward.8} parent=0 // pred_region
    _
  $region25: #{resnet_layer_forward.8} parent=0 // pred_fallthru
    _
  // Predicated region
  $region26: #{resnet_layer_forward.8} parent=0 // pred_check
    _
  $region27: #{resnet_layer_forward.8} parent=0 // pred_check_branch
    %57 = sbr.rel (0) target = $region29
  $region28: #{resnet_layer_forward.8} parent=0 // pred_region
    _
  $region29: #{resnet_layer_forward.8} parent=0 // pred_fallthru
    _

// kernel: resnet_layer_forward.7
$region0: #{resnet_layer_forward.7}
  #allocation0 [shape = 'u32[]', space=smem, size = 0x4, offset = 0x4, fixed_abs, tag = 'smem constant byte address 0x4 - core index']
  #allocation1 [shape = 'u32[144,128]{1,0:T(1,128)}', space=vmem, size = 0x12000, scoped, tag = 'internal scratch']
  %s0 = inlined_call_operand.vmem [shape: bf16[128,128], index: 0, kind: input, shape index: {}]
  %s1 = inlined_call_operand.vmem [shape: bf16[128,128], index: 1, kind: input, shape index: {}]
  %s2 = inlined_call_operand.vmem [shape: f32[128,128], index: 2, kind: output, shape index: {0}]
  %s3 = inlined_call_operand.vmem [shape: f32[1,8,128], index: 3, kind: output, shape index: {1}]
  %4 = xla_tuple %s2, %s3
  %s5 = sld [smem:[#allocation0]]
  $region26: #{resnet_layer_forward.7} parent=0
    _
  %s7 = ssub.s32 1, %s5
  %s8 = scalar_select 0, %s7, %s5
  // Predicated region
  $region2: #{resnet_layer_forward.7} parent=0 // pred_check
    _
  $region3: #{resnet_layer_forward.7} parent=0 // pred_check_branch
    %10 = sbr.rel (0) target = $region5
  $region4: #{resnet_layer_forward.7} parent=0 // pred_region
    _
  $region5: #{resnet_layer_forward.7} parent=0 // pred_fallthru
    _
  // Predicated region
  $region6: #{resnet_layer_forward.7} parent=0 // pred_check
    _
  $region7: #{resnet_layer_forward.7} parent=0 // pred_check_branch
    %12 = sbr.rel (0) target = $region9
  $region8: #{resnet_layer_forward.7} parent=0 // pred_region
    _
  $region9: #{resnet_layer_forward.7} parent=0 // pred_fallthru
    _
  %v14 = vld [vmem:[%s0] sm:$0xf]
  %v15 = vld [vmem:[%s0 + $0x4] sm:$0xf]
  %v16 = vld [vmem:[%s0 + $0x8] sm:$0xf]
  %v17 = vld [vmem:[%s0 + $0xc] sm:$0xf]
  %v18 = vld [vmem:[%s0 + $0x10] sm:$0xf]
  %v19 = vld [vmem:[%s0 + $0x14] sm:$0xf]
  %v20 = vld [vmem:[%s0 + $0x18] sm:$0xf]
  %v21 = vld [vmem:[%s0 + $0x1c] sm:$0xf]
  %v22 = vld [vmem:[%s0 + $0x20] sm:$0xf]
  %v23 = vld [vmem:[%s0 + $0x24] sm:$0xf]
  %v24 = vld [vmem:[%s0 + $0x28] sm:$0xf]
  %v25 = vld [vmem:[%s0 + $0x2c] sm:$0xf]
  %v26 = vld [vmem:[%s0 + $0x30] sm:$0xf]
  %v27 = vld [vmem:[%s0 + $0x34] sm:$0xf]
  %v28 = vld [vmem:[%s0 + $0x38] sm:$0xf]
  %v29 = vld [vmem:[%s0 + $0x3c] sm:$0xf]
  %v30 = vld [vmem:[%s1] sm:$0xf]
  %v31 = vld [vmem:[%s1 + $0x4] sm:$0xf]
  %v32 = vld [vmem:[%s1 + $0x8] sm:$0xf]
  %v33 = vld [vmem:[%s1 + $0xc] sm:$0xf]
  %v34 = vld [vmem:[%s1 + $0x10] sm:$0xf]
  %v35 = vld [vmem:[%s1 + $0x14] sm:$0xf]
  %v36 = vld [vmem:[%s1 + $0x18] sm:$0xf]
  %v37 = vld [vmem:[%s1 + $0x1c] sm:$0xf]
  %v38 = vld [vmem:[%s1 + $0x20] sm:$0xf]
  %v39 = vld [vmem:[%s1 + $0x24] sm:$0xf]
  %v40 = vld [vmem:[%s1 + $0x28] sm:$0xf]
  %v41 = vld [vmem:[%s1 + $0x2c] sm:$0xf]
  %v42 = vld [vmem:[%s1 + $0x30] sm:$0xf]
  %v43 = vld [vmem:[%s1 + $0x34] sm:$0xf]
  %v44 = vld [vmem:[%s1 + $0x38] sm:$0xf]
  %v45 = vld [vmem:[%s1 + $0x3c] sm:$0xf]
  %v62 = vunpack.c.l.b16 %v14
  %v63 = vunpack.c.l.b16 %v15
  %v64 = vunpack.c.l.b16 %v16
  %v65 = vunpack.c.l.b16 %v17
  %v66 = vunpack.c.l.b16 %v18
  %v67 = vunpack.c.l.b16 %v19
  %v68 = vunpack.c.l.b16 %v20
  %v69 = vunpack.c.l.b16 %v21
  %v70 = vunpack.c.l.b16 %v22
  %v71 = vunpack.c.l.b16 %v23
  %v72 = vunpack.c.l.b16 %v24
  %v73 = vunpack.c.l.b16 %v25
  %v74 = vunpack.c.l.b16 %v26
  %v75 = vunpack.c.l.b16 %v27
  %v76 = vunpack.c.l.b16 %v28
  %v77 = vunpack.c.l.b16 %v29
  %v78 = vpack.c.b16 %v63, %v62
  %v79 = vpack.c.b16 %v65, %v64
  %v80 = vpack.c.b16 %v67, %v66
  %v81 = vpack.c.b16 %v69, %v68
  %v82 = vpack.c.b16 %v71, %v70
  %v83 = vpack.c.b16 %v73, %v72
  %v84 = vpack.c.b16 %v75, %v74
  %v85 = vpack.c.b16 %v77, %v76
  %v110 = vunpack.c.l.b16 %v30
  %v111 = vunpack.c.l.b16 %v31
  %v112 = vunpack.c.l.b16 %v32
  %v113 = vunpack.c.l.b16 %v33
  %v114 = vunpack.c.l.b16 %v34
  %v115 = vunpack.c.l.b16 %v35
  %v116 = vunpack.c.l.b16 %v36
  %v117 = vunpack.c.l.b16 %v37
  %v118 = vunpack.c.l.b16 %v38
  %v119 = vunpack.c.l.b16 %v39
  %v120 = vunpack.c.l.b16 %v40
  %v121 = vunpack.c.l.b16 %v41
  %v122 = vunpack.c.l.b16 %v42
  %v123 = vunpack.c.l.b16 %v43
  %v124 = vunpack.c.l.b16 %v44
  %v125 = vunpack.c.l.b16 %v45
  %v126 = vpack.c.b16 %v111, %v110
  %v127 = vpack.c.b16 %v113, %v112
  %v128 = vpack.c.b16 %v115, %v114
  %v129 = vpack.c.b16 %v117, %v116
  %v130 = vpack.c.b16 %v119, %v118
  %v131 = vpack.c.b16 %v121, %v120
  %v132 = vpack.c.b16 %v123, %v122
  %v133 = vpack.c.b16 %v125, %v124
  %142 = vmatprep.subr.bf16.mxu0 0
  %143 = vmatpush1.bf16.msra.mxu0 %v126
  %144 = vmatprep.subr.bf16.mxu0 0
  %145 = vmatpush1.bf16.msra.mxu0 %v127
  %146 = vmatprep.subr.bf16.mxu0 0
  %147 = vmatpush1.bf16.msra.mxu0 %v128
  %148 = vmatprep.subr.bf16.mxu0 0
  %149 = vmatpush1.bf16.msra.mxu0 %v129
  %150 = vmatprep.subr.bf16.mxu0 0
  %151 = vmatpush1.bf16.msra.mxu0 %v130
  %152 = vmatprep.subr.bf16.mxu0 0
  %153 = vmatpush1.bf16.msra.mxu0 %v131
  %154 = vmatprep.subr.bf16.mxu0 0
  %155 = vmatpush1.bf16.msra.mxu0 %v132
  %156 = vmatprep.subr.bf16.mxu0 0
  %157 = vmatpush1.bf16.msra.mxu0 %v133
  %158 = vmatprep.subr.bf16.mxu0 0
  %159 = vmatpush1.bf16.msra.mxu0 0
  %160 = vmatprep.subr.bf16.mxu0 0
  %161 = vmatpush1.bf16.msra.mxu0 0
  %162 = vmatprep.subr.bf16.mxu0 0
  %163 = vmatpush1.bf16.msra.mxu0 0
  %164 = vmatprep.subr.bf16.mxu0 0
  %165 = vmatpush1.bf16.msra.mxu0 0
  %166 = vmatprep.subr.bf16.mxu0 0
  %167 = vmatpush1.bf16.msra.mxu0 0
  %168 = vmatprep.subr.bf16.mxu0 0
  %169 = vmatpush1.bf16.msra.mxu0 0
  %170 = vmatprep.subr.bf16.mxu0 0
  %171 = vmatpush1.bf16.msra.mxu0 0
  %172 = vmatprep.subr.bf16.mxu0 0
  %173 = vmatpush1.bf16.msra.mxu0 0
  %174 = vmatprep.mubr.bf16.mxu0 0
  %175 = vmatmul.mubr.bf16.gmra.mrb[0].mxu0 %v78
  %v176 = vpop.f32.mrb[0].mxu0
  %v177 = vadd.f32 0.0, %v176
  %v178 = vpop.f32.mrb[0].mxu0
  %v179 = vpop.f32.mrb[0].mxu0
  %v180 = vadd.f32 0.0, %v179
  %v181 = vpop.f32.mrb[0].mxu0
  %182 = vmatprep.mubr.bf16.mxu0 0
  %183 = vmatmul.mubr.bf16.gmra.mrb[0].mxu0 %v79
  %v184 = vpop.f32.mrb[0].mxu0
  %v185 = vadd.f32 0.0, %v184
  %v186 = vpop.f32.mrb[0].mxu0
  %v187 = vpop.f32.mrb[0].mxu0
  %v188 = vadd.f32 0.0, %v187
  %v189 = vpop.f32.mrb[0].mxu0
  %190 = vmatprep.mubr.bf16.mxu0 0
  %191 = vmatmul.mubr.bf16.gmra.mrb[0].mxu0 %v80
  %v192 = vpop.f32.mrb[0].mxu0
  %v193 = vadd.f32 0.0, %v192
  %v194 = vpop.f32.mrb[0].mxu0
  %v195 = vpop.f32.mrb[0].mxu0
  %v196 = vadd.f32 0.0, %v195
  %v197 = vpop.f32.mrb[0].mxu0
  %198 = vmatprep.mubr.bf16.mxu0 0
  %199 = vmatmul.mubr.bf16.gmra.mrb[0].mxu0 %v81
  %v200 = vpop.f32.mrb[0].mxu0
  %v201 = vadd.f32 0.0, %v200
  %v202 = vpop.f32.mrb[0].mxu0
  %v203 = vpop.f32.mrb[0].mxu0
  %v204 = vadd.f32 0.0, %v203
  %v205 = vpop.f32.mrb[0].mxu0
  %206 = vmatprep.mubr.bf16.mxu0 0
  %207 = vmatmul.mubr.bf16.gmra.mrb[0].mxu0 %v82
  %v208 = vpop.f32.mrb[0].mxu0
  %v209 = vadd.f32 0.0, %v208
  %v210 = vpop.f32.mrb[0].mxu0
  %v211 = vpop.f32.mrb[0].mxu0
  %v212 = vadd.f32 0.0, %v211
  %v213 = vpop.f32.mrb[0].mxu0
  %214 = vmatprep.mubr.bf16.mxu0 0
  %215 = vmatmul.mubr.bf16.gmra.mrb[0].mxu0 %v83
  %v216 = vpop.f32.mrb[0].mxu0
  %v217 = vadd.f32 0.0, %v216
  %v218 = vpop.f32.mrb[0].mxu0
  %v219 = vpop.f32.mrb[0].mxu0
  %v220 = vadd.f32 0.0, %v219
  %v221 = vpop.f32.mrb[0].mxu0
  %222 = vmatprep.mubr.bf16.mxu0 0
  %223 = vmatmul.mubr.bf16.gmra.mrb[0].mxu0 %v84
  %v224 = vpop.f32.mrb[0].mxu0
  %v225 = vadd.f32 0.0, %v224
  %v226 = vpop.f32.mrb[0].mxu0
  %v227 = vpop.f32.mrb[0].mxu0
  %v228 = vadd.f32 0.0, %v227
  %v229 = vpop.f32.mrb[0].mxu0
  %230 = vmatprep.mubr.bf16.mxu0 0
  %231 = vmatmul.mubr.bf16.gmra.mrb[0].mxu0 %v85
  %v232 = vpop.f32.mrb[0].mxu0
  %v233 = vadd.f32 0.0, %v232
  %v234 = vpop.f32.mrb[0].mxu0
  %v235 = vpop.f32.mrb[0].mxu0
  %v236 = vadd.f32 0.0, %v235
  %v237 = vpop.f32.mrb[0].mxu0
  %238 = vdwg.mxu0
  %239 = vst [vmem:[%s2] sm:$0xff] %v177
  %240 = vst [vmem:[%s2 + $0x8] sm:$0xff] %v180
  %241 = vst [vmem:[%s2 + $0x10] sm:$0xff] %v185
  %242 = vst [vmem:[%s2 + $0x18] sm:$0xff] %v188
  %243 = vst [vmem:[%s2 + $0x20] sm:$0xff] %v193
  %244 = vst [vmem:[%s2 + $0x28] sm:$0xff] %v196
  %245 = vst [vmem:[%s2 + $0x30] sm:$0xff] %v201
  %246 = vst [vmem:[%s2 + $0x38] sm:$0xff] %v204
  %247 = vst [vmem:[%s2 + $0x40] sm:$0xff] %v209
  %248 = vst [vmem:[%s2 + $0x48] sm:$0xff] %v212
  %249 = vst [vmem:[%s2 + $0x50] sm:$0xff] %v217
  %250 = vst [vmem:[%s2 + $0x58] sm:$0xff] %v220
  %251 = vst [vmem:[%s2 + $0x60] sm:$0xff] %v225
  %252 = vst [vmem:[%s2 + $0x68] sm:$0xff] %v228
  %253 = vst [vmem:[%s2 + $0x70] sm:$0xff] %v233
  %254 = vst [vmem:[%s2 + $0x78] sm:$0xff] %v236
  %v255 = vadd.f32 %v177, %v180
  %v256 = vadd.f32 %v255, %v185
  %v257 = vadd.f32 %v256, %v188
  %v258 = vadd.f32 %v257, %v193
  %v259 = vadd.f32 %v258, %v196
  %v260 = vadd.f32 %v259, %v201
  %v261 = vadd.f32 %v260, %v204
  %v262 = vadd.f32 %v261, %v209
  %v263 = vadd.f32 %v262, %v212
  %v264 = vadd.f32 %v263, %v217
  %v265 = vadd.f32 %v264, %v220
  %v266 = vadd.f32 %v265, %v225
  %v267 = vadd.f32 %v266, %v228
  %v268 = vadd.f32 %v267, %v233
  %v269 = vadd.f32 %v268, %v236
  %v270 = vrot.slane %v269, 4
  %v271 = vadd.f32 %v269, %v270
  %v272 = vrot.slane %v271, 2
  %v273 = vadd.f32 %v271, %v272
  %v274 = vrot.slane %v273, 1
  %v275 = vadd.f32 %v273, %v274
  %v276 = vmul.f32 %v177, %v177
  %v277 = vmul.f32 %v180, %v180
  %v278 = vmul.f32 %v185, %v185
  %v279 = vmul.f32 %v188, %v188
  %v280 = vmul.f32 %v193, %v193
  %v281 = vmul.f32 %v196, %v196
  %v282 = vmul.f32 %v201, %v201
  %v283 = vmul.f32 %v204, %v204
  %v284 = vmul.f32 %v209, %v209
  %v285 = vmul.f32 %v212, %v212
  %v286 = vmul.f32 %v217, %v217
  %v287 = vmul.f32 %v220, %v220
  %v288 = vmul.f32 %v225, %v225
  %v289 = vmul.f32 %v228, %v228
  %v290 = vmul.f32 %v233, %v233
  %v291 = vmul.f32 %v236, %v236
  %v292 = vadd.f32 %v276, %v277
  %v293 = vadd.f32 %v292, %v278
  %v294 = vadd.f32 %v293, %v279
  %v295 = vadd.f32 %v294, %v280
  %v296 = vadd.f32 %v295, %v281
  %v297 = vadd.f32 %v296, %v282
  %v298 = vadd.f32 %v297, %v283
  %v299 = vadd.f32 %v298, %v284
  %v300 = vadd.f32 %v299, %v285
  %v301 = vadd.f32 %v300, %v286
  %v302 = vadd.f32 %v301, %v287
  %v303 = vadd.f32 %v302, %v288
  %v304 = vadd.f32 %v303, %v289
  %v305 = vadd.f32 %v304, %v290
  %v306 = vadd.f32 %v305, %v291
  %v307 = vrot.slane %v306, 4
  %v308 = vadd.f32 %v306, %v307
  %v309 = vrot.slane %v308, 2
  %v310 = vadd.f32 %v308, %v309
  %v311 = vrot.slane %v310, 1
  %v312 = vadd.f32 %v310, %v311
  %vm313 = vcmask 1040384
  %v314 = vsel %vm313, %v275, %v312
  %vm315 = vcmask 1041408
  %v316 = vsel %vm315, %v314, 0.0
  %317 = vst [vmem:[%s3] sm:$0xff] %v316
  // Predicated region
  $region10: #{resnet_layer_forward.7} parent=0 // pred_check
    _
  $region11: #{resnet_layer_forward.7} parent=0 // pred_check_branch
    %319 = sbr.rel (0) target = $region13
  $region12: #{resnet_layer_forward.7} parent=0 // pred_region
    _
  $region13: #{resnet_layer_forward.7} parent=0 // pred_fallthru
    _
  // Predicated region
  $region14: #{resnet_layer_forward.7} parent=0 // pred_check
    _
  $region15: #{resnet_layer_forward.7} parent=0 // pred_check_branch
    %321 = sbr.rel (0) target = $region17
  $region16: #{resnet_layer_forward.7} parent=0 // pred_region
    _
  $region17: #{resnet_layer_forward.7} parent=0 // pred_fallthru
    _
  // Predicated region
  $region18: #{resnet_layer_forward.7} parent=0 // pred_check
    _
  $region19: #{resnet_layer_forward.7} parent=0 // pred_check_branch
    %323 = sbr.rel (0) target = $region21
  $region20: #{resnet_layer_forward.7} parent=0 // pred_region
    _
  $region21: #{resnet_layer_forward.7} parent=0 // pred_fallthru
    _
  // Predicated region
  $region22: #{resnet_layer_forward.7} parent=0 // pred_check
    _
  $region23: #{resnet_layer_forward.7} parent=0 // pred_check_branch
    %325 = sbr.rel (0) target = $region25
  $region24: #{resnet_layer_forward.7} parent=0 // pred_region
    _
  $region25: #{resnet_layer_forward.7} parent=0 // pred_fallthru
    _

// kernel: resnet_layer_forward.13
$region0: #{resnet_layer_forward.13}
  #allocation0 [shape = 'u32[]', space=smem, size = 0x4, offset = 0x4, fixed_abs, tag = 'smem constant byte address 0x4 - core index']
  #allocation1 [shape = 'u32[144,128]{1,0:T(1,128)}', space=vmem, size = 0x12000, scoped, tag = 'internal scratch']
  %s0 = inlined_call_operand.vmem [shape: f32[128,128], index: 0, kind: input, shape index: {}]
  %s1 = inlined_call_operand.vmem [shape: f32[1,128], index: 1, kind: input, shape index: {}]
  %s2 = inlined_call_operand.vmem [shape: f32[1,128], index: 2, kind: input, shape index: {}]
  %s3 = inlined_call_operand.vmem [shape: f32[128,128], index: 3, kind: input, shape index: {}]
  %s4 = inlined_call_operand.vmem [shape: f32[1,128], index: 4, kind: input, shape index: {}]
  %s5 = inlined_call_operand.vmem [shape: f32[1,128], index: 5, kind: input, shape index: {}]
  %s6 = inlined_call_operand.vmem [shape: f32[128,128], index: 6, kind: output, shape index: {}]
  %s7 = sld [smem:[#allocation0]]
  $region34: #{resnet_layer_forward.13} parent=0
    _
  %s9 = ssub.s32 1, %s7
  %s10 = scalar_select 0, %s9, %s7
  // Predicated region
  $region2: #{resnet_layer_forward.13} parent=0 // pred_check
    _
  $region3: #{resnet_layer_forward.13} parent=0 // pred_check_branch
    %12 = sbr.rel (0) target = $region5
  $region4: #{resnet_layer_forward.13} parent=0 // pred_region
    _
  $region5: #{resnet_layer_forward.13} parent=0 // pred_fallthru
    _
  // Predicated region
  $region6: #{resnet_layer_forward.13} parent=0 // pred_check
    _
  $region7: #{resnet_layer_forward.13} parent=0 // pred_check_branch
    %14 = sbr.rel (0) target = $region9
  $region8: #{resnet_layer_forward.13} parent=0 // pred_region
    _
  $region9: #{resnet_layer_forward.13} parent=0 // pred_fallthru
    _
  // Predicated region
  $region10: #{resnet_layer_forward.13} parent=0 // pred_check
    _
  $region11: #{resnet_layer_forward.13} parent=0 // pred_check_branch
    %16 = sbr.rel (0) target = $region13
  $region12: #{resnet_layer_forward.13} parent=0 // pred_region
    _
  $region13: #{resnet_layer_forward.13} parent=0 // pred_fallthru
    _
  // Predicated region
  $region14: #{resnet_layer_forward.13} parent=0 // pred_check
    _
  $region15: #{resnet_layer_forward.13} parent=0 // pred_check_branch
    %18 = sbr.rel (0) target = $region17
  $region16: #{resnet_layer_forward.13} parent=0 // pred_region
    _
  $region17: #{resnet_layer_forward.13} parent=0 // pred_fallthru
    _
  // Predicated region
  $region18: #{resnet_layer_forward.13} parent=0 // pred_check
    _
  $region19: #{resnet_layer_forward.13} parent=0 // pred_check_branch
    %20 = sbr.rel (0) target = $region21
  $region20: #{resnet_layer_forward.13} parent=0 // pred_region
    _
  $region21: #{resnet_layer_forward.13} parent=0 // pred_fallthru
    _
  // Predicated region
  $region22: #{resnet_layer_forward.13} parent=0 // pred_check
    _
  $region23: #{resnet_layer_forward.13} parent=0 // pred_check_branch
    %22 = sbr.rel (0) target = $region25
  $region24: #{resnet_layer_forward.13} parent=0 // pred_region
    _
  $region25: #{resnet_layer_forward.13} parent=0 // pred_fallthru
    _
  %v23 = vld [vmem:[%s0] sm:$0xff]
  %v24 = vld [vmem:[%s0 + $0x8] sm:$0xff]
  %v25 = vld [vmem:[%s0 + $0x10] sm:$0xff]
  %v26 = vld [vmem:[%s0 + $0x18] sm:$0xff]
  %v27 = vld [vmem:[%s0 + $0x20] sm:$0xff]
  %v28 = vld [vmem:[%s0 + $0x28] sm:$0xff]
  %v29 = vld [vmem:[%s0 + $0x30] sm:$0xff]
  %v30 = vld [vmem:[%s0 + $0x38] sm:$0xff]
  %v31 = vld [vmem:[%s0 + $0x40] sm:$0xff]
  %v32 = vld [vmem:[%s0 + $0x48] sm:$0xff]
  %v33 = vld [vmem:[%s0 + $0x50] sm:$0xff]
  %v34 = vld [vmem:[%s0 + $0x58] sm:$0xff]
  %v35 = vld [vmem:[%s0 + $0x60] sm:$0xff]
  %v36 = vld [vmem:[%s0 + $0x68] sm:$0xff]
  %v37 = vld [vmem:[%s0 + $0x70] sm:$0xff]
  %v38 = vld [vmem:[%s0 + $0x78] sm:$0xff]
  %v39 = vld [vmem:[%s1] sm:$0x1]
  %v41 = vlaneseq
  %v42 = vshrl.u32 %v41, 7
  %v43 = vsub.s32 0, %v42
  %v44 = vrot.slane %v39, %v43
  %v46 = vmul.f32 %v23, %v44
  %v47 = vmul.f32 %v24, %v44
  %v48 = vmul.f32 %v25, %v44
  %v49 = vmul.f32 %v26, %v44
  %v50 = vmul.f32 %v27, %v44
  %v51 = vmul.f32 %v28, %v44
  %v52 = vmul.f32 %v29, %v44
  %v53 = vmul.f32 %v30, %v44
  %v54 = vmul.f32 %v31, %v44
  %v55 = vmul.f32 %v32, %v44
  %v56 = vmul.f32 %v33, %v44
  %v57 = vmul.f32 %v34, %v44
  %v58 = vmul.f32 %v35, %v44
  %v59 = vmul.f32 %v36, %v44
  %v60 = vmul.f32 %v37, %v44
  %v61 = vmul.f32 %v38, %v44
  %v62 = vld [vmem:[%s2] sm:$0x1]
  %v64 = vlaneseq
  %v65 = vshrl.u32 %v64, 7
  %v66 = vsub.s32 0, %v65
  %v67 = vrot.slane %v62, %v66
  %v69 = vadd.f32 %v46, %v67
  %v70 = vadd.f32 %v47, %v67
  %v71 = vadd.f32 %v48, %v67
  %v72 = vadd.f32 %v49, %v67
  %v73 = vadd.f32 %v50, %v67
  %v74 = vadd.f32 %v51, %v67
  %v75 = vadd.f32 %v52, %v67
  %v76 = vadd.f32 %v53, %v67
  %v77 = vadd.f32 %v54, %v67
  %v78 = vadd.f32 %v55, %v67
  %v79 = vadd.f32 %v56, %v67
  %v80 = vadd.f32 %v57, %v67
  %v81 = vadd.f32 %v58, %v67
  %v82 = vadd.f32 %v59, %v67
  %v83 = vadd.f32 %v60, %v67
  %v84 = vadd.f32 %v61, %v67
  %v85 = vld [vmem:[%s3] sm:$0xff]
  %v86 = vld [vmem:[%s3 + $0x8] sm:$0xff]
  %v87 = vld [vmem:[%s3 + $0x10] sm:$0xff]
  %v88 = vld [vmem:[%s3 + $0x18] sm:$0xff]
  %v89 = vld [vmem:[%s3 + $0x20] sm:$0xff]
  %v90 = vld [vmem:[%s3 + $0x28] sm:$0xff]
  %v91 = vld [vmem:[%s3 + $0x30] sm:$0xff]
  %v92 = vld [vmem:[%s3 + $0x38] sm:$0xff]
  %v93 = vld [vmem:[%s3 + $0x40] sm:$0xff]
  %v94 = vld [vmem:[%s3 + $0x48] sm:$0xff]
  %v95 = vld [vmem:[%s3 + $0x50] sm:$0xff]
  %v96 = vld [vmem:[%s3 + $0x58] sm:$0xff]
  %v97 = vld [vmem:[%s3 + $0x60] sm:$0xff]
  %v98 = vld [vmem:[%s3 + $0x68] sm:$0xff]
  %v99 = vld [vmem:[%s3 + $0x70] sm:$0xff]
  %v100 = vld [vmem:[%s3 + $0x78] sm:$0xff]
  %v101 = vld [vmem:[%s4] sm:$0x1]
  %v103 = vlaneseq
  %v104 = vshrl.u32 %v103, 7
  %v105 = vsub.s32 0, %v104
  %v106 = vrot.slane %v101, %v105
  %v108 = vmul.f32 %v85, %v106
  %v109 = vmul.f32 %v86, %v106
  %v110 = vmul.f32 %v87, %v106
  %v111 = vmul.f32 %v88, %v106
  %v112 = vmul.f32 %v89, %v106
  %v113 = vmul.f32 %v90, %v106
  %v114 = vmul.f32 %v91, %v106
  %v115 = vmul.f32 %v92, %v106
  %v116 = vmul.f32 %v93, %v106
  %v117 = vmul.f32 %v94, %v106
  %v118 = vmul.f32 %v95, %v106
  %v119 = vmul.f32 %v96, %v106
  %v120 = vmul.f32 %v97, %v106
  %v121 = vmul.f32 %v98, %v106
  %v122 = vmul.f32 %v99, %v106
  %v123 = vmul.f32 %v100, %v106
  %v124 = vld [vmem:[%s5] sm:$0x1]
  %v126 = vlaneseq
  %v127 = vshrl.u32 %v126, 7
  %v128 = vsub.s32 0, %v127
  %v129 = vrot.slane %v124, %v128
  %v131 = vadd.f32 %v108, %v129
  %v132 = vadd.f32 %v109, %v129
  %v133 = vadd.f32 %v110, %v129
  %v134 = vadd.f32 %v111, %v129
  %v135 = vadd.f32 %v112, %v129
  %v136 = vadd.f32 %v113, %v129
  %v137 = vadd.f32 %v114, %v129
  %v138 = vadd.f32 %v115, %v129
  %v139 = vadd.f32 %v116, %v129
  %v140 = vadd.f32 %v117, %v129
  %v141 = vadd.f32 %v118, %v129
  %v142 = vadd.f32 %v119, %v129
  %v143 = vadd.f32 %v120, %v129
  %v144 = vadd.f32 %v121, %v129
  %v145 = vadd.f32 %v122, %v129
  %v146 = vadd.f32 %v123, %v129
  %v147 = vadd.f32 %v69, %v131
  %v148 = vadd.f32 %v70, %v132
  %v149 = vadd.f32 %v71, %v133
  %v150 = vadd.f32 %v72, %v134
  %v151 = vadd.f32 %v73, %v135
  %v152 = vadd.f32 %v74, %v136
  %v153 = vadd.f32 %v75, %v137
  %v154 = vadd.f32 %v76, %v138
  %v155 = vadd.f32 %v77, %v139
  %v156 = vadd.f32 %v78, %v140
  %v157 = vadd.f32 %v79, %v141
  %v158 = vadd.f32 %v80, %v142
  %v159 = vadd.f32 %v81, %v143
  %v160 = vadd.f32 %v82, %v144
  %v161 = vadd.f32 %v83, %v145
  %v162 = vadd.f32 %v84, %v146
  %v163 = vmax.f32 %v147, 0.0
  %v164 = vmax.f32 %v148, 0.0
  %v165 = vmax.f32 %v149, 0.0
  %v166 = vmax.f32 %v150, 0.0
  %v167 = vmax.f32 %v151, 0.0
  %v168 = vmax.f32 %v152, 0.0
  %v169 = vmax.f32 %v153, 0.0
  %v170 = vmax.f32 %v154, 0.0
  %v171 = vmax.f32 %v155, 0.0
  %v172 = vmax.f32 %v156, 0.0
  %v173 = vmax.f32 %v157, 0.0
  %v174 = vmax.f32 %v158, 0.0
  %v175 = vmax.f32 %v159, 0.0
  %v176 = vmax.f32 %v160, 0.0
  %v177 = vmax.f32 %v161, 0.0
  %v178 = vmax.f32 %v162, 0.0
  %179 = vst [vmem:[%s6] sm:$0xff] %v163
  %180 = vst [vmem:[%s6 + $0x8] sm:$0xff] %v164
  %181 = vst [vmem:[%s6 + $0x10] sm:$0xff] %v165
  %182 = vst [vmem:[%s6 + $0x18] sm:$0xff] %v166
  %183 = vst [vmem:[%s6 + $0x20] sm:$0xff] %v167
  %184 = vst [vmem:[%s6 + $0x28] sm:$0xff] %v168
  %185 = vst [vmem:[%s6 + $0x30] sm:$0xff] %v169
  %186 = vst [vmem:[%s6 + $0x38] sm:$0xff] %v170
  %187 = vst [vmem:[%s6 + $0x40] sm:$0xff] %v171
  %188 = vst [vmem:[%s6 + $0x48] sm:$0xff] %v172
  %189 = vst [vmem:[%s6 + $0x50] sm:$0xff] %v173
  %190 = vst [vmem:[%s6 + $0x58] sm:$0xff] %v174
  %191 = vst [vmem:[%s6 + $0x60] sm:$0xff] %v175
  %192 = vst [vmem:[%s6 + $0x68] sm:$0xff] %v176
  %193 = vst [vmem:[%s6 + $0x70] sm:$0xff] %v177
  %194 = vst [vmem:[%s6 + $0x78] sm:$0xff] %v178
  // Predicated region
  $region26: #{resnet_layer_forward.13} parent=0 // pred_check
    _
  $region27: #{resnet_layer_forward.13} parent=0 // pred_check_branch
    %196 = sbr.rel (0) target = $region29
  $region28: #{resnet_layer_forward.13} parent=0 // pred_region
    _
  $region29: #{resnet_layer_forward.13} parent=0 // pred_fallthru
    _
  // Predicated region
  $region30: #{resnet_layer_forward.13} parent=0 // pred_check
    _
  $region31: #{resnet_layer_forward.13} parent=0 // pred_check_branch
    %198 = sbr.rel (0) target = $region33
  $region32: #{resnet_layer_forward.13} parent=0 // pred_region
    _
  $region33: #{resnet_layer_forward.13} parent=0 // pred_fallthru
    _

// kernel: resnet_layer_forward.10
$region0: #{resnet_layer_forward.10}
  #allocation0 [shape = 'u32[]', space=smem, size = 0x4, offset = 0x4, fixed_abs, tag = 'smem constant byte address 0x4 - core index']
  #allocation1 [shape = 'u32[144,128]{1,0:T(1,128)}', space=vmem, size = 0x12000, scoped, tag = 'internal scratch']
  %s0 = inlined_call_operand.vmem [shape: bf16[128,128], index: 0, kind: input, shape index: {}]
  %s1 = inlined_call_operand.vmem [shape: bf16[128,128], index: 1, kind: input, shape index: {}]
  %s2 = inlined_call_operand.vmem [shape: bf16[128,128], index: 2, kind: input, shape index: {}]
  %s3 = inlined_call_operand.vmem [shape: bf16[128,128], index: 3, kind: input, shape index: {}]
  %s4 = inlined_call_operand.vmem [shape: f32[128,128], index: 4, kind: output, shape index: {0}]
  %s5 = inlined_call_operand.vmem [shape: f32[128,128], index: 5, kind: output, shape index: {1}]
  %s6 = inlined_call_operand.vmem [shape: f32[1,8,128], index: 6, kind: output, shape index: {2}]
  %s7 = inlined_call_operand.vmem [shape: f32[1,8,128], index: 7, kind: output, shape index: {3}]
  %8 = xla_tuple %s4, %s5, %s6, %s7
  %s9 = sld [smem:[#allocation0]]
  $region50: #{resnet_layer_forward.10} parent=0
    _
  %s11 = ssub.s32 1, %s9
  %s12 = scalar_select 0, %s11, %s9
  // Predicated region
  $region2: #{resnet_layer_forward.10} parent=0 // pred_check
    _
  $region3: #{resnet_layer_forward.10} parent=0 // pred_check_branch
    %14 = sbr.rel (0) target = $region5
  $region4: #{resnet_layer_forward.10} parent=0 // pred_region
    _
  $region5: #{resnet_layer_forward.10} parent=0 // pred_fallthru
    _
  // Predicated region
  $region6: #{resnet_layer_forward.10} parent=0 // pred_check
    _
  $region7: #{resnet_layer_forward.10} parent=0 // pred_check_branch
    %16 = sbr.rel (0) target = $region9
  $region8: #{resnet_layer_forward.10} parent=0 // pred_region
    _
  $region9: #{resnet_layer_forward.10} parent=0 // pred_fallthru
    _
  // Predicated region
  $region10: #{resnet_layer_forward.10} parent=0 // pred_check
    _
  $region11: #{resnet_layer_forward.10} parent=0 // pred_check_branch
    %18 = sbr.rel (0) target = $region13
  $region12: #{resnet_layer_forward.10} parent=0 // pred_region
    _
  $region13: #{resnet_layer_forward.10} parent=0 // pred_fallthru
    _
  // Predicated region
  $region14: #{resnet_layer_forward.10} parent=0 // pred_check
    _
  $region15: #{resnet_layer_forward.10} parent=0 // pred_check_branch
    %20 = sbr.rel (0) target = $region17
  $region16: #{resnet_layer_forward.10} parent=0 // pred_region
    _
  $region17: #{resnet_layer_forward.10} parent=0 // pred_fallthru
    _
  %v22 = vld [vmem:[%s0] sm:$0xf]
  %v23 = vld [vmem:[%s0 + $0x4] sm:$0xf]
  %v24 = vld [vmem:[%s0 + $0x8] sm:$0xf]
  %v25 = vld [vmem:[%s0 + $0xc] sm:$0xf]
  %v26 = vld [vmem:[%s0 + $0x10] sm:$0xf]
  %v27 = vld [vmem:[%s0 + $0x14] sm:$0xf]
  %v28 = vld [vmem:[%s0 + $0x18] sm:$0xf]
  %v29 = vld [vmem:[%s0 + $0x1c] sm:$0xf]
  %v30 = vld [vmem:[%s0 + $0x20] sm:$0xf]
  %v31 = vld [vmem:[%s0 + $0x24] sm:$0xf]
  %v32 = vld [vmem:[%s0 + $0x28] sm:$0xf]
  %v33 = vld [vmem:[%s0 + $0x2c] sm:$0xf]
  %v34 = vld [vmem:[%s0 + $0x30] sm:$0xf]
  %v35 = vld [vmem:[%s0 + $0x34] sm:$0xf]
  %v36 = vld [vmem:[%s0 + $0x38] sm:$0xf]
  %v37 = vld [vmem:[%s0 + $0x3c] sm:$0xf]
  %v38 = vld [vmem:[%s1] sm:$0xf]
  %v39 = vld [vmem:[%s1 + $0x4] sm:$0xf]
  %v40 = vld [vmem:[%s1 + $0x8] sm:$0xf]
  %v41 = vld [vmem:[%s1 + $0xc] sm:$0xf]
  %v42 = vld [vmem:[%s1 + $0x10] sm:$0xf]
  %v43 = vld [vmem:[%s1 + $0x14] sm:$0xf]
  %v44 = vld [vmem:[%s1 + $0x18] sm:$0xf]
  %v45 = vld [vmem:[%s1 + $0x1c] sm:$0xf]
  %v46 = vld [vmem:[%s1 + $0x20] sm:$0xf]
  %v47 = vld [vmem:[%s1 + $0x24] sm:$0xf]
  %v48 = vld [vmem:[%s1 + $0x28] sm:$0xf]
  %v49 = vld [vmem:[%s1 + $0x2c] sm:$0xf]
  %v50 = vld [vmem:[%s1 + $0x30] sm:$0xf]
  %v51 = vld [vmem:[%s1 + $0x34] sm:$0xf]
  %v52 = vld [vmem:[%s1 + $0x38] sm:$0xf]
  %v53 = vld [vmem:[%s1 + $0x3c] sm:$0xf]
  %v70 = vunpack.c.l.b16 %v22
  %v71 = vunpack.c.l.b16 %v23
  %v72 = vunpack.c.l.b16 %v24
  %v73 = vunpack.c.l.b16 %v25
  %v74 = vunpack.c.l.b16 %v26
  %v75 = vunpack.c.l.b16 %v27
  %v76 = vunpack.c.l.b16 %v28
  %v77 = vunpack.c.l.b16 %v29
  %v78 = vunpack.c.l.b16 %v30
  %v79 = vunpack.c.l.b16 %v31
  %v80 = vunpack.c.l.b16 %v32
  %v81 = vunpack.c.l.b16 %v33
  %v82 = vunpack.c.l.b16 %v34
  %v83 = vunpack.c.l.b16 %v35
  %v84 = vunpack.c.l.b16 %v36
  %v85 = vunpack.c.l.b16 %v37
  %v86 = vpack.c.b16 %v71, %v70
  %v87 = vpack.c.b16 %v73, %v72
  %v88 = vpack.c.b16 %v75, %v74
  %v89 = vpack.c.b16 %v77, %v76
  %v90 = vpack.c.b16 %v79, %v78
  %v91 = vpack.c.b16 %v81, %v80
  %v92 = vpack.c.b16 %v83, %v82
  %v93 = vpack.c.b16 %v85, %v84
  %v118 = vunpack.c.l.b16 %v38
  %v119 = vunpack.c.l.b16 %v39
  %v120 = vunpack.c.l.b16 %v40
  %v121 = vunpack.c.l.b16 %v41
  %v122 = vunpack.c.l.b16 %v42
  %v123 = vunpack.c.l.b16 %v43
  %v124 = vunpack.c.l.b16 %v44
  %v125 = vunpack.c.l.b16 %v45
  %v126 = vunpack.c.l.b16 %v46
  %v127 = vunpack.c.l.b16 %v47
  %v128 = vunpack.c.l.b16 %v48
  %v129 = vunpack.c.l.b16 %v49
  %v130 = vunpack.c.l.b16 %v50
  %v131 = vunpack.c.l.b16 %v51
  %v132 = vunpack.c.l.b16 %v52
  %v133 = vunpack.c.l.b16 %v53
  %v134 = vpack.c.b16 %v119, %v118
  %v135 = vpack.c.b16 %v121, %v120
  %v136 = vpack.c.b16 %v123, %v122
  %v137 = vpack.c.b16 %v125, %v124
  %v138 = vpack.c.b16 %v127, %v126
  %v139 = vpack.c.b16 %v129, %v128
  %v140 = vpack.c.b16 %v131, %v130
  %v141 = vpack.c.b16 %v133, %v132
  %150 = vmatprep.subr.bf16.mxu0 0
  %151 = vmatpush1.bf16.msra.mxu0 %v134
  %152 = vmatprep.subr.bf16.mxu0 0
  %153 = vmatpush1.bf16.msra.mxu0 %v135
  %154 = vmatprep.subr.bf16.mxu0 0
  %155 = vmatpush1.bf16.msra.mxu0 %v136
  %156 = vmatprep.subr.bf16.mxu0 0
  %157 = vmatpush1.bf16.msra.mxu0 %v137
  %158 = vmatprep.subr.bf16.mxu0 0
  %159 = vmatpush1.bf16.msra.mxu0 %v138
  %160 = vmatprep.subr.bf16.mxu0 0
  %161 = vmatpush1.bf16.msra.mxu0 %v139
  %162 = vmatprep.subr.bf16.mxu0 0
  %163 = vmatpush1.bf16.msra.mxu0 %v140
  %164 = vmatprep.subr.bf16.mxu0 0
  %165 = vmatpush1.bf16.msra.mxu0 %v141
  %166 = vmatprep.subr.bf16.mxu0 0
  %167 = vmatpush1.bf16.msra.mxu0 0
  %168 = vmatprep.subr.bf16.mxu0 0
  %169 = vmatpush1.bf16.msra.mxu0 0
  %170 = vmatprep.subr.bf16.mxu0 0
  %171 = vmatpush1.bf16.msra.mxu0 0
  %172 = vmatprep.subr.bf16.mxu0 0
  %173 = vmatpush1.bf16.msra.mxu0 0
  %174 = vmatprep.subr.bf16.mxu0 0
  %175 = vmatpush1.bf16.msra.mxu0 0
  %176 = vmatprep.subr.bf16.mxu0 0
  %177 = vmatpush1.bf16.msra.mxu0 0
  %178 = vmatprep.subr.bf16.mxu0 0
  %179 = vmatpush1.bf16.msra.mxu0 0
  %180 = vmatprep.subr.bf16.mxu0 0
  %181 = vmatpush1.bf16.msra.mxu0 0
  %182 = vmatprep.mubr.bf16.mxu0 0
  %183 = vmatmul.mubr.bf16.gmra.mrb[0].mxu0 %v86
  %v184 = vpop.f32.mrb[0].mxu0
  %v185 = vadd.f32 0.0, %v184
  %v186 = vpop.f32.mrb[0].mxu0
  %v187 = vpop.f32.mrb[0].mxu0
  %v188 = vadd.f32 0.0, %v187
  %v189 = vpop.f32.mrb[0].mxu0
  %190 = vmatprep.mubr.bf16.mxu0 0
  %191 = vmatmul.mubr.bf16.gmra.mrb[0].mxu0 %v87
  %v192 = vpop.f32.mrb[0].mxu0
  %v193 = vadd.f32 0.0, %v192
  %v194 = vpop.f32.mrb[0].mxu0
  %v195 = vpop.f32.mrb[0].mxu0
  %v196 = vadd.f32 0.0, %v195
  %v197 = vpop.f32.mrb[0].mxu0
  %198 = vmatprep.mubr.bf16.mxu0 0
  %199 = vmatmul.mubr.bf16.gmra.mrb[0].mxu0 %v88
  %v200 = vpop.f32.mrb[0].mxu0
  %v201 = vadd.f32 0.0, %v200
  %v202 = vpop.f32.mrb[0].mxu0
  %v203 = vpop.f32.mrb[0].mxu0
  %v204 = vadd.f32 0.0, %v203
  %v205 = vpop.f32.mrb[0].mxu0
  %206 = vmatprep.mubr.bf16.mxu0 0
  %207 = vmatmul.mubr.bf16.gmra.mrb[0].mxu0 %v89
  %v208 = vpop.f32.mrb[0].mxu0
  %v209 = vadd.f32 0.0, %v208
  %v210 = vpop.f32.mrb[0].mxu0
  %v211 = vpop.f32.mrb[0].mxu0
  %v212 = vadd.f32 0.0, %v211
  %v213 = vpop.f32.mrb[0].mxu0
  %214 = vmatprep.mubr.bf16.mxu0 0
  %215 = vmatmul.mubr.bf16.gmra.mrb[0].mxu0 %v90
  %v216 = vpop.f32.mrb[0].mxu0
  %v217 = vadd.f32 0.0, %v216
  %v218 = vpop.f32.mrb[0].mxu0
  %v219 = vpop.f32.mrb[0].mxu0
  %v220 = vadd.f32 0.0, %v219
  %v221 = vpop.f32.mrb[0].mxu0
  %222 = vmatprep.mubr.bf16.mxu0 0
  %223 = vmatmul.mubr.bf16.gmra.mrb[0].mxu0 %v91
  %v224 = vpop.f32.mrb[0].mxu0
  %v225 = vadd.f32 0.0, %v224
  %v226 = vpop.f32.mrb[0].mxu0
  %v227 = vpop.f32.mrb[0].mxu0
  %v228 = vadd.f32 0.0, %v227
  %v229 = vpop.f32.mrb[0].mxu0
  %230 = vmatprep.mubr.bf16.mxu0 0
  %231 = vmatmul.mubr.bf16.gmra.mrb[0].mxu0 %v92
  %v232 = vpop.f32.mrb[0].mxu0
  %v233 = vadd.f32 0.0, %v232
  %v234 = vpop.f32.mrb[0].mxu0
  %v235 = vpop.f32.mrb[0].mxu0
  %v236 = vadd.f32 0.0, %v235
  %v237 = vpop.f32.mrb[0].mxu0
  %238 = vmatprep.mubr.bf16.mxu0 0
  %239 = vmatmul.mubr.bf16.gmra.mrb[0].mxu0 %v93
  %v240 = vpop.f32.mrb[0].mxu0
  %v241 = vadd.f32 0.0, %v240
  %v242 = vpop.f32.mrb[0].mxu0
  %v243 = vpop.f32.mrb[0].mxu0
  %v244 = vadd.f32 0.0, %v243
  %v245 = vpop.f32.mrb[0].mxu0
  %246 = vdwg.mxu0
  %v247 = vld [vmem:[%s2] sm:$0xf]
  %v248 = vld [vmem:[%s2 + $0x4] sm:$0xf]
  %v249 = vld [vmem:[%s2 + $0x8] sm:$0xf]
  %v250 = vld [vmem:[%s2 + $0xc] sm:$0xf]
  %v251 = vld [vmem:[%s2 + $0x10] sm:$0xf]
  %v252 = vld [vmem:[%s2 + $0x14] sm:$0xf]
  %v253 = vld [vmem:[%s2 + $0x18] sm:$0xf]
  %v254 = vld [vmem:[%s2 + $0x1c] sm:$0xf]
  %v255 = vld [vmem:[%s2 + $0x20] sm:$0xf]
  %v256 = vld [vmem:[%s2 + $0x24] sm:$0xf]
  %v257 = vld [vmem:[%s2 + $0x28] sm:$0xf]
  %v258 = vld [vmem:[%s2 + $0x2c] sm:$0xf]
  %v259 = vld [vmem:[%s2 + $0x30] sm:$0xf]
  %v260 = vld [vmem:[%s2 + $0x34] sm:$0xf]
  %v261 = vld [vmem:[%s2 + $0x38] sm:$0xf]
  %v262 = vld [vmem:[%s2 + $0x3c] sm:$0xf]
  %v263 = vld [vmem:[%s3] sm:$0xf]
  %v264 = vld [vmem:[%s3 + $0x4] sm:$0xf]
  %v265 = vld [vmem:[%s3 + $0x8] sm:$0xf]
  %v266 = vld [vmem:[%s3 + $0xc] sm:$0xf]
  %v267 = vld [vmem:[%s3 + $0x10] sm:$0xf]
  %v268 = vld [vmem:[%s3 + $0x14] sm:$0xf]
  %v269 = vld [vmem:[%s3 + $0x18] sm:$0xf]
  %v270 = vld [vmem:[%s3 + $0x1c] sm:$0xf]
  %v271 = vld [vmem:[%s3 + $0x20] sm:$0xf]
  %v272 = vld [vmem:[%s3 + $0x24] sm:$0xf]
  %v273 = vld [vmem:[%s3 + $0x28] sm:$0xf]
  %v274 = vld [vmem:[%s3 + $0x2c] sm:$0xf]
  %v275 = vld [vmem:[%s3 + $0x30] sm:$0xf]
  %v276 = vld [vmem:[%s3 + $0x34] sm:$0xf]
  %v277 = vld [vmem:[%s3 + $0x38] sm:$0xf]
  %v278 = vld [vmem:[%s3 + $0x3c] sm:$0xf]
  %v295 = vunpack.c.l.b16 %v247
  %v296 = vunpack.c.l.b16 %v248
  %v297 = vunpack.c.l.b16 %v249
  %v298 = vunpack.c.l.b16 %v250
  %v299 = vunpack.c.l.b16 %v251
  %v300 = vunpack.c.l.b16 %v252
  %v301 = vunpack.c.l.b16 %v253
  %v302 = vunpack.c.l.b16 %v254
  %v303 = vunpack.c.l.b16 %v255
  %v304 = vunpack.c.l.b16 %v256
  %v305 = vunpack.c.l.b16 %v257
  %v306 = vunpack.c.l.b16 %v258
  %v307 = vunpack.c.l.b16 %v259
  %v308 = vunpack.c.l.b16 %v260
  %v309 = vunpack.c.l.b16 %v261
  %v310 = vunpack.c.l.b16 %v262
  %v311 = vpack.c.b16 %v296, %v295
  %v312 = vpack.c.b16 %v298, %v297
  %v313 = vpack.c.b16 %v300, %v299
  %v314 = vpack.c.b16 %v302, %v301
  %v315 = vpack.c.b16 %v304, %v303
  %v316 = vpack.c.b16 %v306, %v305
  %v317 = vpack.c.b16 %v308, %v307
  %v318 = vpack.c.b16 %v310, %v309
  %v343 = vunpack.c.l.b16 %v263
  %v344 = vunpack.c.l.b16 %v264
  %v345 = vunpack.c.l.b16 %v265
  %v346 = vunpack.c.l.b16 %v266
  %v347 = vunpack.c.l.b16 %v267
  %v348 = vunpack.c.l.b16 %v268
  %v349 = vunpack.c.l.b16 %v269
  %v350 = vunpack.c.l.b16 %v270
  %v351 = vunpack.c.l.b16 %v271
  %v352 = vunpack.c.l.b16 %v272
  %v353 = vunpack.c.l.b16 %v273
  %v354 = vunpack.c.l.b16 %v274
  %v355 = vunpack.c.l.b16 %v275
  %v356 = vunpack.c.l.b16 %v276
  %v357 = vunpack.c.l.b16 %v277
  %v358 = vunpack.c.l.b16 %v278
  %v359 = vpack.c.b16 %v344, %v343
  %v360 = vpack.c.b16 %v346, %v345
  %v361 = vpack.c.b16 %v348, %v347
  %v362 = vpack.c.b16 %v350, %v349
  %v363 = vpack.c.b16 %v352, %v351
  %v364 = vpack.c.b16 %v354, %v353
  %v365 = vpack.c.b16 %v356, %v355
  %v366 = vpack.c.b16 %v358, %v357
  %375 = vmatprep.subr.bf16.mxu0 0
  %376 = vmatpush1.bf16.msra.mxu0 %v359
  %377 = vmatprep.subr.bf16.mxu0 0
  %378 = vmatpush1.bf16.msra.mxu0 %v360
  %379 = vmatprep.subr.bf16.mxu0 0
  %380 = vmatpush1.bf16.msra.mxu0 %v361
  %381 = vmatprep.subr.bf16.mxu0 0
  %382 = vmatpush1.bf16.msra.mxu0 %v362
  %383 = vmatprep.subr.bf16.mxu0 0
  %384 = vmatpush1.bf16.msra.mxu0 %v363
  %385 = vmatprep.subr.bf16.mxu0 0
  %386 = vmatpush1.bf16.msra.mxu0 %v364
  %387 = vmatprep.subr.bf16.mxu0 0
  %388 = vmatpush1.bf16.msra.mxu0 %v365
  %389 = vmatprep.subr.bf16.mxu0 0
  %390 = vmatpush1.bf16.msra.mxu0 %v366
  %391 = vmatprep.subr.bf16.mxu0 0
  %392 = vmatpush1.bf16.msra.mxu0 0
  %393 = vmatprep.subr.bf16.mxu0 0
  %394 = vmatpush1.bf16.msra.mxu0 0
  %395 = vmatprep.subr.bf16.mxu0 0
  %396 = vmatpush1.bf16.msra.mxu0 0
  %397 = vmatprep.subr.bf16.mxu0 0
  %398 = vmatpush1.bf16.msra.mxu0 0
  %399 = vmatprep.subr.bf16.mxu0 0
  %400 = vmatpush1.bf16.msra.mxu0 0
  %401 = vmatprep.subr.bf16.mxu0 0
  %402 = vmatpush1.bf16.msra.mxu0 0
  %403 = vmatprep.subr.bf16.mxu0 0
  %404 = vmatpush1.bf16.msra.mxu0 0
  %405 = vmatprep.subr.bf16.mxu0 0
  %406 = vmatpush1.bf16.msra.mxu0 0
  %407 = vmatprep.mubr.bf16.mxu0 0
  %408 = vmatmul.mubr.bf16.gmra.mrb[0].mxu0 %v311
  %v409 = vpop.f32.mrb[0].mxu0
  %v410 = vadd.f32 0.0, %v409
  %v411 = vpop.f32.mrb[0].mxu0
  %v412 = vpop.f32.mrb[0].mxu0
  %v413 = vadd.f32 0.0, %v412
  %v414 = vpop.f32.mrb[0].mxu0
  %415 = vmatprep.mubr.bf16.mxu0 0
  %416 = vmatmul.mubr.bf16.gmra.mrb[0].mxu0 %v312
  %v417 = vpop.f32.mrb[0].mxu0
  %v418 = vadd.f32 0.0, %v417
  %v419 = vpop.f32.mrb[0].mxu0
  %v420 = vpop.f32.mrb[0].mxu0
  %v421 = vadd.f32 0.0, %v420
  %v422 = vpop.f32.mrb[0].mxu0
  %423 = vmatprep.mubr.bf16.mxu0 0
  %424 = vmatmul.mubr.bf16.gmra.mrb[0].mxu0 %v313
  %v425 = vpop.f32.mrb[0].mxu0
  %v426 = vadd.f32 0.0, %v425
  %v427 = vpop.f32.mrb[0].mxu0
  %v428 = vpop.f32.mrb[0].mxu0
  %v429 = vadd.f32 0.0, %v428
  %v430 = vpop.f32.mrb[0].mxu0
  %431 = vmatprep.mubr.bf16.mxu0 0
  %432 = vmatmul.mubr.bf16.gmra.mrb[0].mxu0 %v314
  %v433 = vpop.f32.mrb[0].mxu0
  %v434 = vadd.f32 0.0, %v433
  %v435 = vpop.f32.mrb[0].mxu0
  %v436 = vpop.f32.mrb[0].mxu0
  %v437 = vadd.f32 0.0, %v436
  %v438 = vpop.f32.mrb[0].mxu0
  %439 = vmatprep.mubr.bf16.mxu0 0
  %440 = vmatmul.mubr.bf16.gmra.mrb[0].mxu0 %v315
  %v441 = vpop.f32.mrb[0].mxu0
  %v442 = vadd.f32 0.0, %v441
  %v443 = vpop.f32.mrb[0].mxu0
  %v444 = vpop.f32.mrb[0].mxu0
  %v445 = vadd.f32 0.0, %v444
  %v446 = vpop.f32.mrb[0].mxu0
  %447 = vmatprep.mubr.bf16.mxu0 0
  %448 = vmatmul.mubr.bf16.gmra.mrb[0].mxu0 %v316
  %v449 = vpop.f32.mrb[0].mxu0
  %v450 = vadd.f32 0.0, %v449
  %v451 = vpop.f32.mrb[0].mxu0
  %v452 = vpop.f32.mrb[0].mxu0
  %v453 = vadd.f32 0.0, %v452
  %v454 = vpop.f32.mrb[0].mxu0
  %455 = vmatprep.mubr.bf16.mxu0 0
  %456 = vmatmul.mubr.bf16.gmra.mrb[0].mxu0 %v317
  %v457 = vpop.f32.mrb[0].mxu0
  %v458 = vadd.f32 0.0, %v457
  %v459 = vpop.f32.mrb[0].mxu0
  %v460 = vpop.f32.mrb[0].mxu0
  %v461 = vadd.f32 0.0, %v460
  %v462 = vpop.f32.mrb[0].mxu0
  %463 = vmatprep.mubr.bf16.mxu0 0
  %464 = vmatmul.mubr.bf16.gmra.mrb[0].mxu0 %v318
  %v465 = vpop.f32.mrb[0].mxu0
  %v466 = vadd.f32 0.0, %v465
  %v467 = vpop.f32.mrb[0].mxu0
  %v468 = vpop.f32.mrb[0].mxu0
  %v469 = vadd.f32 0.0, %v468
  %v470 = vpop.f32.mrb[0].mxu0
  %471 = vdwg.mxu0
  %472 = vst [vmem:[%s4] sm:$0xff] %v185
  %473 = vst [vmem:[%s4 + $0x8] sm:$0xff] %v188
  %474 = vst [vmem:[%s4 + $0x10] sm:$0xff] %v193
  %475 = vst [vmem:[%s4 + $0x18] sm:$0xff] %v196
  %476 = vst [vmem:[%s4 + $0x20] sm:$0xff] %v201
  %477 = vst [vmem:[%s4 + $0x28] sm:$0xff] %v204
  %478 = vst [vmem:[%s4 + $0x30] sm:$0xff] %v209
  %479 = vst [vmem:[%s4 + $0x38] sm:$0xff] %v212
  %480 = vst [vmem:[%s4 + $0x40] sm:$0xff] %v217
  %481 = vst [vmem:[%s4 + $0x48] sm:$0xff] %v220
  %482 = vst [vmem:[%s4 + $0x50] sm:$0xff] %v225
  %483 = vst [vmem:[%s4 + $0x58] sm:$0xff] %v228
  %484 = vst [vmem:[%s4 + $0x60] sm:$0xff] %v233
  %485 = vst [vmem:[%s4 + $0x68] sm:$0xff] %v236
  %486 = vst [vmem:[%s4 + $0x70] sm:$0xff] %v241
  %487 = vst [vmem:[%s4 + $0x78] sm:$0xff] %v244
  %488 = vst [vmem:[%s5] sm:$0xff] %v410
  %489 = vst [vmem:[%s5 + $0x8] sm:$0xff] %v413
  %490 = vst [vmem:[%s5 + $0x10] sm:$0xff] %v418
  %491 = vst [vmem:[%s5 + $0x18] sm:$0xff] %v421
  %492 = vst [vmem:[%s5 + $0x20] sm:$0xff] %v426
  %493 = vst [vmem:[%s5 + $0x28] sm:$0xff] %v429
  %494 = vst [vmem:[%s5 + $0x30] sm:$0xff] %v434
  %495 = vst [vmem:[%s5 + $0x38] sm:$0xff] %v437
  %496 = vst [vmem:[%s5 + $0x40] sm:$0xff] %v442
  %497 = vst [vmem:[%s5 + $0x48] sm:$0xff] %v445
  %498 = vst [vmem:[%s5 + $0x50] sm:$0xff] %v450
  %499 = vst [vmem:[%s5 + $0x58] sm:$0xff] %v453
  %500 = vst [vmem:[%s5 + $0x60] sm:$0xff] %v458
  %501 = vst [vmem:[%s5 + $0x68] sm:$0xff] %v461
  %502 = vst [vmem:[%s5 + $0x70] sm:$0xff] %v466
  %503 = vst [vmem:[%s5 + $0x78] sm:$0xff] %v469
  %v504 = vadd.f32 %v185, %v188
  %v505 = vadd.f32 %v504, %v193
  %v506 = vadd.f32 %v505, %v196
  %v507 = vadd.f32 %v506, %v201
  %v508 = vadd.f32 %v507, %v204
  %v509 = vadd.f32 %v508, %v209
  %v510 = vadd.f32 %v509, %v212
  %v511 = vadd.f32 %v510, %v217
  %v512 = vadd.f32 %v511, %v220
  %v513 = vadd.f32 %v512, %v225
  %v514 = vadd.f32 %v513, %v228
  %v515 = vadd.f32 %v514, %v233
  %v516 = vadd.f32 %v515, %v236
  %v517 = vadd.f32 %v516, %v241
  %v518 = vadd.f32 %v517, %v244
  %v519 = vrot.slane %v518, 4
  %v520 = vadd.f32 %v518, %v519
  %v521 = vrot.slane %v520, 2
  %v522 = vadd.f32 %v520, %v521
  %v523 = vrot.slane %v522, 1
  %v524 = vadd.f32 %v522, %v523
  %v525 = vmul.f32 %v185, %v185
  %v526 = vmul.f32 %v188, %v188
  %v527 = vmul.f32 %v193, %v193
  %v528 = vmul.f32 %v196, %v196
  %v529 = vmul.f32 %v201, %v201
  %v530 = vmul.f32 %v204, %v204
  %v531 = vmul.f32 %v209, %v209
  %v532 = vmul.f32 %v212, %v212
  %v533 = vmul.f32 %v217, %v217
  %v534 = vmul.f32 %v220, %v220
  %v535 = vmul.f32 %v225, %v225
  %v536 = vmul.f32 %v228, %v228
  %v537 = vmul.f32 %v233, %v233
  %v538 = vmul.f32 %v236, %v236
  %v539 = vmul.f32 %v241, %v241
  %v540 = vmul.f32 %v244, %v244
  %v541 = vadd.f32 %v525, %v526
  %v542 = vadd.f32 %v541, %v527
  %v543 = vadd.f32 %v542, %v528
  %v544 = vadd.f32 %v543, %v529
  %v545 = vadd.f32 %v544, %v530
  %v546 = vadd.f32 %v545, %v531
  %v547 = vadd.f32 %v546, %v532
  %v548 = vadd.f32 %v547, %v533
  %v549 = vadd.f32 %v548, %v534
  %v550 = vadd.f32 %v549, %v535
  %v551 = vadd.f32 %v550, %v536
  %v552 = vadd.f32 %v551, %v537
  %v553 = vadd.f32 %v552, %v538
  %v554 = vadd.f32 %v553, %v539
  %v555 = vadd.f32 %v554, %v540
  %v556 = vrot.slane %v555, 4
  %v557 = vadd.f32 %v555, %v556
  %v558 = vrot.slane %v557, 2
  %v559 = vadd.f32 %v557, %v558
  %v560 = vrot.slane %v559, 1
  %v561 = vadd.f32 %v559, %v560
  %vm562 = vcmask 1040384
  %v563 = vsel %vm562, %v524, %v561
  %vm564 = vcmask 1041408
  %v565 = vsel %vm564, %v563, 0.0
  %566 = vst [vmem:[%s6] sm:$0xff] %v565
  %v567 = vadd.f32 %v410, %v413
  %v568 = vadd.f32 %v567, %v418
  %v569 = vadd.f32 %v568, %v421
  %v570 = vadd.f32 %v569, %v426
  %v571 = vadd.f32 %v570, %v429
  %v572 = vadd.f32 %v571, %v434
  %v573 = vadd.f32 %v572, %v437
  %v574 = vadd.f32 %v573, %v442
  %v575 = vadd.f32 %v574, %v445
  %v576 = vadd.f32 %v575, %v450
  %v577 = vadd.f32 %v576, %v453
  %v578 = vadd.f32 %v577, %v458
  %v579 = vadd.f32 %v578, %v461
  %v580 = vadd.f32 %v579, %v466
  %v581 = vadd.f32 %v580, %v469
  %v582 = vrot.slane %v581, 4
  %v583 = vadd.f32 %v581, %v582
  %v584 = vrot.slane %v583, 2
  %v585 = vadd.f32 %v583, %v584
  %v586 = vrot.slane %v585, 1
  %v587 = vadd.f32 %v585, %v586
  %v588 = vmul.f32 %v410, %v410
  %v589 = vmul.f32 %v413, %v413
  %v590 = vmul.f32 %v418, %v418
  %v591 = vmul.f32 %v421, %v421
  %v592 = vmul.f32 %v426, %v426
  %v593 = vmul.f32 %v429, %v429
  %v594 = vmul.f32 %v434, %v434
  %v595 = vmul.f32 %v437, %v437
  %v596 = vmul.f32 %v442, %v442
  %v597 = vmul.f32 %v445, %v445
  %v598 = vmul.f32 %v450, %v450
  %v599 = vmul.f32 %v453, %v453
  %v600 = vmul.f32 %v458, %v458
  %v601 = vmul.f32 %v461, %v461
  %v602 = vmul.f32 %v466, %v466
  %v603 = vmul.f32 %v469, %v469
  %v604 = vadd.f32 %v588, %v589
  %v605 = vadd.f32 %v604, %v590
  %v606 = vadd.f32 %v605, %v591
  %v607 = vadd.f32 %v606, %v592
  %v608 = vadd.f32 %v607, %v593
  %v609 = vadd.f32 %v608, %v594
  %v610 = vadd.f32 %v609, %v595
  %v611 = vadd.f32 %v610, %v596
  %v612 = vadd.f32 %v611, %v597
  %v613 = vadd.f32 %v612, %v598
  %v614 = vadd.f32 %v613, %v599
  %v615 = vadd.f32 %v614, %v600
  %v616 = vadd.f32 %v615, %v601
  %v617 = vadd.f32 %v616, %v602
  %v618 = vadd.f32 %v617, %v603
  %v619 = vrot.slane %v618, 4
  %v620 = vadd.f32 %v618, %v619
  %v621 = vrot.slane %v620, 2
  %v622 = vadd.f32 %v620, %v621
  %v623 = vrot.slane %v622, 1
  %v624 = vadd.f32 %v622, %v623
  %v625 = vsel %vm562, %v587, %v624
  %v626 = vsel %vm564, %v625, 0.0
  %627 = vst [vmem:[%s7] sm:$0xff] %v626
  // Predicated region
  $region18: #{resnet_layer_forward.10} parent=0 // pred_check
    _
  $region19: #{resnet_layer_forward.10} parent=0 // pred_check_branch
    %629 = sbr.rel (0) target = $region21
  $region20: #{resnet_layer_forward.10} parent=0 // pred_region
    _
  $region21: #{resnet_layer_forward.10} parent=0 // pred_fallthru
    _
  // Predicated region
  $region22: #{resnet_layer_forward.10} parent=0 // pred_check
    _
  $region23: #{resnet_layer_forward.10} parent=0 // pred_check_branch
    %631 = sbr.rel (0) target = $region25
  $region24: #{resnet_layer_forward.10} parent=0 // pred_region
    _
  $region25: #{resnet_layer_forward.10} parent=0 // pred_fallthru
    _
  // Predicated region
  $region26: #{resnet_layer_forward.10} parent=0 // pred_check
    _
  $region27: #{resnet_layer_forward.10} parent=0 // pred_check_branch
    %633 = sbr.rel (0) target = $region29
  $region28: #{resnet_layer_forward.10} parent=0 // pred_region
    _
  $region29: #{resnet_layer_forward.10} parent=0 // pred_fallthru
    _
  // Predicated region
  $region30: #{resnet_layer_forward.10} parent=0 // pred_check
    _
  $region31: #{resnet_layer_forward.10} parent=0 // pred_check_branch
    %635 = sbr.rel (0) target = $region33
  $region32: #{resnet_layer_forward.10} parent=0 // pred_region
    _
  $region33: #{resnet_layer_forward.10} parent=0 // pred_fallthru
    _
  // Predicated region
  $region34: #{resnet_layer_forward.10} parent=0 // pred_check
    _
  $region35: #{resnet_layer_forward.10} parent=0 // pred_check_branch
    %637 = sbr.rel (0) target = $region37
  $region36: #{resnet_layer_forward.10} parent=0 // pred_region
    _
  $region37: #{resnet_layer_forward.10} parent=0 // pred_fallthru
    _
  // Predicated region
  $region38: #{resnet_layer_forward.10} parent=0 // pred_check
    _
  $region39: #{resnet_layer_forward.10} parent=0 // pred_check_branch
    %639 = sbr.rel (0) target = $region41
  $region40: #{resnet_layer_forward.10} parent=0 // pred_region
    _
  $region41: #{resnet_layer_forward.10} parent=0 // pred_fallthru
    _
  // Predicated region
  $region42: #{resnet_layer_forward.10} parent=0 // pred_check
    _
  $region43: #{resnet_layer_forward.10} parent=0 // pred_check_branch
    %641 = sbr.rel (0) target = $region45
  $region44: #{resnet_layer_forward.10} parent=0 // pred_region
    _
  $region45: #{resnet_layer_forward.10} parent=0 // pred_fallthru
    _
  // Predicated region
  $region46: #{resnet_layer_forward.10} parent=0 // pred_check
    _
  $region47: #{resnet_layer_forward.10} parent=0 // pred_check_branch
    %643 = sbr.rel (0) target = $region49
  $region48: #{resnet_layer_forward.10} parent=0 // pred_region
    _
  $region49: #{resnet_layer_forward.10} parent=0 // pred_fallthru
    _

</llo_original>
